<compile_context>
chip_gen: v5e
topology: v5e:2x2
jax: 0.10.0
libtpu: 0.0.40
codegen_flags: <defaults>
</compile_context>

<pallas_src>
import functools

import jax
import jax.numpy as jnp
from jax import lax
from jax.experimental import pallas as pl
from jax.experimental.pallas import tpu as pltpu


def make_divisible(v, divisor=8, min_value=None):
    min_value = min_value or divisor
    new_v = max(min_value, int(v + divisor / 2) // divisor * divisor)
    if new_v < 0.9 * v:
        new_v += divisor
    return new_v


# ---------------------------------------------------------------------------
# Fused kernel: fc1 -> depthwise3x3(+bias)*gamma + residual -> fc2 -> SE gate
# One batch element per grid step; everything stays on-chip.
# ---------------------------------------------------------------------------
def _semlp_fused_kernel(H, W,
                        x_ref, w1t_ref, b1_ref, k9_ref, bdw_ref, gamma_ref,
                        w2t_ref, b2_ref, s1t_ref, s1b_ref, s2t_ref, s2b_ref,
                        o_ref, hp_ref):
    del H  # implied by N // W; kept in the signature for documentation
    N = x_ref.shape[0]
    Ch = w1t_ref.shape[1]
    PAD = ((W + 1 + 7) // 8) * 8          # sublane-aligned pad >= max |shift| = W+1

    # ---- fc1 (MXU, f32 accumulate) ------------------------------------------
    h = jnp.dot(x_ref[...], w1t_ref[...], preferred_element_type=jnp.float32)
    h = h + b1_ref[...].astype(jnp.float32)                         # (N, Ch)
    # NOTE: SEMlp defines self.act (GELU) but never applies it in forward();
    # linear=False so there is no ReLU either; Dropout(p=0.0) is the identity.

    # ---- depthwise 3x3 conv, flat (N, Ch) layout -----------------------------
    # Zero-pad h by PAD rows on each side inside a VMEM scratch; a tap (kh, kw)
    # is then a static shifted slice.  Horizontal taps that would wrap across
    # an image row are masked out per output row.
    hp_ref[0:PAD, :] = jnp.zeros((PAD, Ch), jnp.float32)
    hp_ref[PAD + N:2 * PAD + N, :] = jnp.zeros((PAD, Ch), jnp.float32)
    hp_ref[PAD:PAD + N, :] = h

    col = lax.broadcasted_iota(jnp.int32, (N, 1), 0) % W
    mask_l = (col != 0).astype(jnp.float32)          # valid rows for kw==0 (dw=-1)
    mask_r = (col != W - 1).astype(jnp.float32)      # valid rows for kw==2 (dw=+1)

    k = k9_ref[...].astype(jnp.float32)                              # (9, Ch)
    acc = jnp.zeros((N, Ch), jnp.float32)
    for kh in range(3):
        for kw in range(3):
            off = PAD + (kh - 1) * W + (kw - 1)                      # static int
            v = hp_ref[off:off + N, :] * k[3 * kh + kw]              # (Ch,) lane bcast
            if kw == 0:
                v = v * mask_l
            elif kw == 2:
                v = v * mask_r
            acc = acc + v
    y = gamma_ref[...].astype(jnp.float32) * (acc + bdw_ref[...].astype(jnp.float32)) + h

    # ---- fc2 (MXU) ------------------------------------------------------------
    z = jnp.dot(y, w2t_ref[...].astype(jnp.float32),
                preferred_element_type=jnp.float32)
    z = z + b2_ref[...].astype(jnp.float32)                          # (N, Cout)

    # ---- SqueezeExcite ----------------------------------------------------------
    pooled = jnp.sum(z, axis=0, keepdims=True) * (1.0 / N)           # (1, Cout) f32
    s = jnp.dot(pooled, s1t_ref[...].astype(jnp.float32),
                preferred_element_type=jnp.float32) + s1b_ref[...].astype(jnp.float32)
    s = jnp.maximum(s, 0.0)                                          # (1, Cr)
    s = jnp.dot(s, s2t_ref[...].astype(jnp.float32),
                preferred_element_type=jnp.float32) + s2b_ref[...].astype(jnp.float32)
    gate = jax.nn.sigmoid(s)                                         # (1, Cout)
    o_ref[...] = (z * gate).astype(o_ref.dtype)                      # lane-dense store


def semlp_pallas(x, H, W, params):
    """Fused SEMlp.forward for x: (B, N, C_in), N == H*W."""
    B, N, Cin = x.shape
    Ch = params["w_fc1"].shape[0]
    Cout = params["w_fc2"].shape[0]
    Cr = params["w_se1"].shape[0]
    dtype = x.dtype
    itemsize = dtype.itemsize
    PAD = ((W + 1 + 7) // 8) * 8

    # Depthwise 3x3 taps laid out (9, Ch): tap index = 3*kh + kw, channel on lanes.
    k9 = params["w_dw"].reshape(Ch, 9).T

    # --- VMEM budget (double-buffered x/out blocks, resident weights, scratch,
    #     plus f32 temporaries), capped against the detected capacity so the
    #     same code compiles on v7x (64 MiB physical) and v5e/v6e (128 MiB). ---
    block_bytes = N * (Cin + Cout) * itemsize
    w_bytes = itemsize * (Cin * Ch + Ch * Cout + 2 * Cout * Cr
                          + 9 * Ch + 3 * Ch + 2 * Cout + Cr)
    scratch_bytes = (N + 2 * PAD) * Ch * 4
    live_bytes = 4 * N * max(Ch, Cout) * 4            # h / acc / y / z temporaries
    try:
        vmem_cap = pltpu.get_tpu_info().vmem_capacity_bytes
    except Exception:
        vmem_cap = 64 << 20                           # conservative (v7x-sized)
    needed = 2 * block_bytes + 2 * w_bytes + scratch_bytes + live_bytes + (4 << 20)
    vmem_limit = int(min(max(needed, 16 << 20), vmem_cap * 3 // 4))
    # TODO(synk): for very large H*W where one (N, C) slab does not fit VMEM,
    # split into an N-tiled pooled pass followed by an N-tiled gating pass.

    cost = pl.CostEstimate(
        flops=int(B * (2 * N * Cin * Ch + 2 * N * Ch * Cout + 18 * N * Ch
                       + 4 * Cout * Cr + 2 * N * Cout)),
        transcendentals=int(B * Cout),                 # one sigmoid per (b, c)
        bytes_accessed=int(B * block_bytes + w_bytes),
    )

    return pl.pallas_call(
        functools.partial(_semlp_fused_kernel, H, W),
        out_shape=jax.ShapeDtypeStruct((B, N, Cout), dtype),
        grid_spec=pltpu.PrefetchScalarGridSpec(
            num_scalar_prefetch=0,
            grid=(B,),
            in_specs=[
                # Leading batch dim squeezed (None) -> kernel sees (N, Cin).
                pl.BlockSpec((None, N, Cin), lambda i: (i, 0, 0)),
                # Grid-invariant weights / per-channel vectors (fetched once).
                pl.BlockSpec((Cin, Ch), lambda i: (0, 0)),    # fc1 weight (pre-T)
                pl.BlockSpec((1, Ch), lambda i: (0, 0)),      # fc1 bias
                pl.BlockSpec((9, Ch), lambda i: (0, 0)),      # dwconv taps
                pl.BlockSpec((1, Ch), lambda i: (0, 0)),      # dwconv bias
                pl.BlockSpec((1, Ch), lambda i: (0, 0)),      # gamma
                pl.BlockSpec((Ch, Cout), lambda i: (0, 0)),   # fc2 weight (pre-T)
                pl.BlockSpec((1, Cout), lambda i: (0, 0)),    # fc2 bias
                pl.BlockSpec((Cout, Cr), lambda i: (0, 0)),   # SE reduce (pre-T)
                pl.BlockSpec((1, Cr), lambda i: (0, 0)),      # SE reduce bias
                pl.BlockSpec((Cr, Cout), lambda i: (0, 0)),   # SE expand (pre-T)
                pl.BlockSpec((1, Cout), lambda i: (0, 0)),    # SE expand bias
            ],
            out_specs=pl.BlockSpec((None, N, Cout), lambda i: (i, 0, 0)),
            scratch_shapes=[pltpu.VMEM((N + 2 * PAD, Ch), jnp.float32)],
        ),
        compiler_params=pltpu.CompilerParams(
            # One batch element per grid step; "parallel" lets v7x's two
            # TensorCores shard batches (no-op on single-TC v5e/v6e).
            dimension_semantics=("parallel",),
            vmem_limit_bytes=vmem_limit,
        ),
        cost_estimate=cost,
    )(x,
      params["w_fc1"].T, params["b_fc1"].reshape(1, Ch),
      k9, params["b_dw"].reshape(1, Ch), params["gamma"].reshape(1, Ch),
      params["w_fc2"].T, params["b_fc2"].reshape(1, Cout),
      params["w_se1"].T, params["b_se1"].reshape(1, Cr),
      params["w_se2"].T, params["b_se2"].reshape(1, Cout))


@functools.partial(jax.jit, static_argnums=(1, 2))
def semlp_forward(x, H, W, params):
    return semlp_pallas(x, H, W, params)


# ---------------------------------------------------------------------------
# Pure-JAX reference (mirrors the PyTorch module op-for-op)
# ---------------------------------------------------------------------------
def semlp_reference(x, H, W, p):
    hi = lax.Precision.HIGHEST
    B, N, C = x.shape
    Ch = p["w_fc1"].shape[0]
    h = jnp.einsum("bnc,hc->bnh", x, p["w_fc1"], precision=hi) + p["b_fc1"]
    himg = h.transpose(0, 2, 1).reshape(B, Ch, H, W)
    dw = lax.conv_general_dilated(
        himg, p["w_dw"], window_strides=(1, 1), padding=((1, 1), (1, 1)),
        dimension_numbers=("NCHW", "OIHW", "NCHW"),
        feature_group_count=Ch, precision=hi)
    dw = dw + p["b_dw"][None, :, None, None]
    dw = dw.reshape(B, Ch, N).transpose(0, 2, 1)
    y = p["gamma"] * dw + h
    z = jnp.einsum("bnh,oh->bno", y, p["w_fc2"], precision=hi) + p["b_fc2"]
    zimg = z.transpose(0, 2, 1).reshape(B, C, H, W)
    pooled = zimg.mean(axis=(2, 3))
    s = jnp.maximum(
        jnp.einsum("bc,rc->br", pooled, p["w_se1"], precision=hi) + p["b_se1"], 0.0)
    s = jnp.einsum("br,cr->bc", s, p["w_se2"], precision=hi) + p["b_se2"]
    gate = jax.nn.sigmoid(s)
    return (zimg * gate[:, :, None, None]).reshape(B, C, N).transpose(0, 2, 1)


def init_semlp_params(key, in_features, hidden_features, se_ratio=0.25):
    out_features = in_features
    reduced_chs = make_divisible(out_features * se_ratio, 1)  # SqueezeExcite(divisor=1)
    ks = jax.random.split(key, 11)

    def n(k, shape, s):
        return jax.random.normal(k, shape, jnp.float32) * s

    return dict(
        w_fc1=n(ks[0], (hidden_features, in_features), 0.05),
        b_fc1=n(ks[1], (hidden_features,), 0.05),
        w_dw=n(ks[2], (hidden_features, 1, 3, 3), 0.2),        # depthwise conv weight
        b_dw=n(ks[3], (hidden_features,), 0.05),
        gamma=1.0 + n(ks[4], (hidden_features,), 0.1),
        w_fc2=n(ks[5], (out_features, hidden_features), 0.05),
        b_fc2=n(ks[6], (out_features,), 0.05),
        # SqueezeExcite 1x1 convs == dense layers over channels.
        w_se1=n(ks[7], (reduced_chs, out_features), 0.5),
        b_se1=n(ks[8], (reduced_chs,), 0.1),
        w_se2=n(ks[9], (out_features, reduced_chs), 0.5),
        b_se2=n(ks[10], (out_features,), 0.1),
    )


if __name__ == "__main__":
    B, H, W = 2, 8, 8
    N = H * W
    in_features = 128        # channel dim sits on lanes -> lane-dense gating/stores
    hidden_features = 128

    key = jax.random.PRNGKey(0)
    kx, kp = jax.random.split(key)
    x = jax.random.normal(kx, (B, N, in_features), dtype=jnp.float32)
    params = init_semlp_params(kp, in_features, hidden_features)

    out = jax.block_until_ready(semlp_forward(x, H, W, params))
    assert out.shape == (B, N, in_features)

    ref = semlp_reference(x, H, W, params)
    # Tolerance leaves headroom for MXU multi-pass f32 vs XLA HIGHEST-precision
    # matmul differences in fc1/fc2; conv/elementwise/SE stages agree to ~1e-6.
    assert jnp.allclose(out, ref, atol=5e-3, rtol=5e-3), "mismatch vs reference"

    print("KERNEL_OK")
</pallas_src>

<mosaic_0001>
module attributes {stable_mosaic.version = 11 : i64} {
  func.func @_semlp_fused_kernel(%arg0: i32, %arg1: memref<1x64x128xf32, #tpu.memory_space<vmem>>, %arg2: memref<128x128xf32, #tpu.memory_space<vmem>>, %arg3: memref<1x128xf32, #tpu.memory_space<vmem>>, %arg4: memref<9x128xf32, #tpu.memory_space<vmem>>, %arg5: memref<1x128xf32, #tpu.memory_space<vmem>>, %arg6: memref<1x128xf32, #tpu.memory_space<vmem>>, %arg7: memref<128x128xf32, #tpu.memory_space<vmem>>, %arg8: memref<1x128xf32, #tpu.memory_space<vmem>>, %arg9: memref<128x32xf32, #tpu.memory_space<vmem>>, %arg10: memref<1x32xf32, #tpu.memory_space<vmem>>, %arg11: memref<32x128xf32, #tpu.memory_space<vmem>>, %arg12: memref<1x128xf32, #tpu.memory_space<vmem>>, %arg13: memref<1x64x128xf32, #tpu.memory_space<vmem>>, %arg14: memref<96x128xf32, #tpu.memory_space<vmem>>) attributes {dimension_semantics = [#tpu.dimension_semantics<parallel>], iteration_bounds = array<i64: 2>, scalar_prefetch = 0 : i64, scratch_operands = 1 : i64, tpu.core_type = #tpu.core_type<tc>, window_params = [{transform_indices = @transform_0, window_bounds = array<i64: 1, 64, 128>}, {pipeline_mode = #tpu.pipeline_mode<synchronous>, transform_indices = @transform_1, window_bounds = array<i64: 128, 128>}, {pipeline_mode = #tpu.pipeline_mode<synchronous>, transform_indices = @transform_2, window_bounds = array<i64: 1, 128>}, {pipeline_mode = #tpu.pipeline_mode<synchronous>, transform_indices = @transform_3, window_bounds = array<i64: 9, 128>}, {pipeline_mode = #tpu.pipeline_mode<synchronous>, transform_indices = @transform_4, window_bounds = array<i64: 1, 128>}, {pipeline_mode = #tpu.pipeline_mode<synchronous>, transform_indices = @transform_5, window_bounds = array<i64: 1, 128>}, {pipeline_mode = #tpu.pipeline_mode<synchronous>, transform_indices = @transform_6, window_bounds = array<i64: 128, 128>}, {pipeline_mode = #tpu.pipeline_mode<synchronous>, transform_indices = @transform_7, window_bounds = array<i64: 1, 128>}, {pipeline_mode = #tpu.pipeline_mode<synchronous>, transform_indices = @transform_8, window_bounds = array<i64: 128, 32>}, {pipeline_mode = #tpu.pipeline_mode<synchronous>, transform_indices = @transform_9, window_bounds = array<i64: 1, 32>}, {pipeline_mode = #tpu.pipeline_mode<synchronous>, transform_indices = @transform_10, window_bounds = array<i64: 32, 128>}, {pipeline_mode = #tpu.pipeline_mode<synchronous>, transform_indices = @transform_11, window_bounds = array<i64: 1, 128>}, {transform_indices = @transform_12, window_bounds = array<i64: 1, 64, 128>}]} {
    %c0 = arith.constant 0 : index
    %c0_0 = arith.constant 0 : index
    %c0_1 = arith.constant 0 : index
    %0 = vector.load %arg1[%c0, %c0_0, %c0_1] : memref<1x64x128xf32, #tpu.memory_space<vmem>>, vector<1x64x128xf32>
    %1 = vector.shape_cast %0 : vector<1x64x128xf32> to vector<64x128xf32>
    %c0_2 = arith.constant 0 : index
    %c0_3 = arith.constant 0 : index
    %2 = vector.load %arg2[%c0_2, %c0_3] : memref<128x128xf32, #tpu.memory_space<vmem>>, vector<128x128xf32>
    %cst = arith.constant dense<0.000000e+00> : vector<64x128xf32>
    %3 = tpu.matmul %1, %2, %cst {dimension_numbers = #tpu.dot_dimension_numbers<[1], [0], [0], [1], [0, 0, 1, 1], [], []>} : vector<64x128xf32>, vector<128x128xf32>, vector<64x128xf32> -> vector<64x128xf32>
    %c0_4 = arith.constant 0 : index
    %c0_5 = arith.constant 0 : index
    %4 = vector.load %arg3[%c0_4, %c0_5] : memref<1x128xf32, #tpu.memory_space<vmem>>, vector<1x128xf32>
    %5 = vector.broadcast %4 : vector<1x128xf32> to vector<64x128xf32>
    %6 = arith.addf %3, %5 : vector<64x128xf32>
    %cst_6 = arith.constant 0.000000e+00 : f32
    %7 = vector.broadcast %cst_6 : f32 to vector<16x128xf32>
    %c0_7 = arith.constant 0 : index
    %c0_8 = arith.constant 0 : index
    %8 = vector.load %arg14[%c0_7, %c0_8] : memref<96x128xf32, #tpu.memory_space<vmem>>, vector<16x128xf32>
    tpu.vector_store %arg14[%c0_7, %c0_8], %7 {strides = array<i32>} : memref<96x128xf32, #tpu.memory_space<vmem>>, vector<16x128xf32>,
    %cst_9 = arith.constant 0.000000e+00 : f32
    %9 = vector.broadcast %cst_9 : f32 to vector<16x128xf32>
    %c80 = arith.constant 80 : index
    %c0_10 = arith.constant 0 : index
    %10 = vector.load %arg14[%c80, %c0_10] : memref<96x128xf32, #tpu.memory_space<vmem>>, vector<16x128xf32>
    tpu.vector_store %arg14[%c80, %c0_10], %9 {strides = array<i32>} : memref<96x128xf32, #tpu.memory_space<vmem>>, vector<16x128xf32>,
    %c16 = arith.constant 16 : index
    %c0_11 = arith.constant 0 : index
    %11 = vector.load %arg14[%c16, %c0_11] : memref<96x128xf32, #tpu.memory_space<vmem>>, vector<64x128xf32>
    tpu.vector_store %arg14[%c16, %c0_11], %6 {strides = array<i32>} : memref<96x128xf32, #tpu.memory_space<vmem>>, vector<64x128xf32>,
    %12 = tpu.iota {dimensions = array<i32: 0>} : vector<64x1xi32>
    %c8_i32 = arith.constant 8 : i32
    %c0_i32 = arith.constant 0 : i32
    %13 = arith.cmpi eq, %c8_i32, %c0_i32 : i32
    %c1_i32 = arith.constant 1 : i32
    %14 = arith.select %13, %c1_i32, %c8_i32 : i32
    %15 = vector.broadcast %14 : i32 to vector<64x1xi32>
    %16 = arith.remsi %12, %15 : vector<64x1xi32>
    %c0_i32_12 = arith.constant 0 : i32
    %17 = vector.broadcast %c0_i32_12 : i32 to vector<64x1xi32>
    %18 = arith.cmpi ne, %16, %17 : vector<64x1xi32>
    %c0_i32_13 = arith.constant 0 : i32
    %19 = vector.broadcast %c0_i32_13 : i32 to vector<64x1xi32>
    %20 = arith.cmpi slt, %16, %19 : vector<64x1xi32>
    %c0_i32_14 = arith.constant 0 : i32
    %21 = arith.cmpi slt, %14, %c0_i32_14 : i32
    %22 = vector.broadcast %21 : i1 to vector<64x1xi1>
    %23 = vector.broadcast %22 : vector<64x1xi1> to vector<64x1xi1>
    %24 = arith.xori %20, %23 : vector<64x1xi1>
    %25 = arith.andi %24, %18 : vector<64x1xi1>
    %26 = vector.broadcast %14 : i32 to vector<64x1xi32>
    %27 = arith.addi %16, %26 : vector<64x1xi32>
    %28 = arith.select %25, %27, %16 : vector<64x1xi1>, vector<64x1xi32>
    %c0_i32_15 = arith.constant 0 : i32
    %29 = vector.broadcast %c0_i32_15 : i32 to vector<64x1xi32>
    %30 = arith.cmpi ne, %28, %29 : vector<64x1xi32>
    %31 = arith.extui %30 : vector<64x1xi1> to vector<64x1xi32>
    %32 = arith.sitofp %31 : vector<64x1xi32> to vector<64x1xf32>
    %c7_i32 = arith.constant 7 : i32
    %33 = vector.broadcast %c7_i32 : i32 to vector<64x1xi32>
    %34 = arith.cmpi ne, %28, %33 : vector<64x1xi32>
    %35 = arith.extui %34 : vector<64x1xi1> to vector<64x1xi32>
    %36 = arith.sitofp %35 : vector<64x1xi32> to vector<64x1xf32>
    %c0_16 = arith.constant 0 : index
    %c0_17 = arith.constant 0 : index
    %37 = vector.load %arg4[%c0_16, %c0_17] : memref<9x128xf32, #tpu.memory_space<vmem>>, vector<9x128xf32>
    %cst_18 = arith.constant 0.000000e+00 : f32
    %38 = vector.broadcast %cst_18 : f32 to vector<64x128xf32>
    %c7 = arith.constant 7 : index
    %c0_19 = arith.constant 0 : index
    %39 = vector.load %arg14[%c7, %c0_19] : memref<96x128xf32, #tpu.memory_space<vmem>>, vector<64x128xf32>
    %40 = vector.extract_strided_slice %37 {offsets = [0, 0], sizes = [1, 128], strides = [1, 1]} : vector<9x128xf32> to vector<1x128xf32>
    %41 = vector.shape_cast %40 : vector<1x128xf32> to vector<128xf32>
    %42 = vector.shape_cast %41 : vector<128xf32> to vector<1x128xf32>
    %43 = vector.broadcast %42 : vector<1x128xf32> to vector<64x128xf32>
    %44 = arith.mulf %39, %43 : vector<64x128xf32>
    %45 = vector.broadcast %32 : vector<64x1xf32> to vector<64x128xf32>
    %46 = arith.mulf %44, %45 : vector<64x128xf32>
    %47 = arith.addf %38, %46 : vector<64x128xf32>
    %c8 = arith.constant 8 : index
    %c0_20 = arith.constant 0 : index
    %48 = vector.load %arg14[%c8, %c0_20] : memref<96x128xf32, #tpu.memory_space<vmem>>, vector<64x128xf32>
    %49 = vector.extract_strided_slice %37 {offsets = [1, 0], sizes = [1, 128], strides = [1, 1]} : vector<9x128xf32> to vector<1x128xf32>
    %50 = vector.shape_cast %49 : vector<1x128xf32> to vector<128xf32>
    %51 = vector.shape_cast %50 : vector<128xf32> to vector<1x128xf32>
    %52 = vector.broadcast %51 : vector<1x128xf32> to vector<64x128xf32>
    %53 = arith.mulf %48, %52 : vector<64x128xf32>
    %54 = arith.addf %47, %53 : vector<64x128xf32>
    %c9 = arith.constant 9 : index
    %c0_21 = arith.constant 0 : index
    %55 = vector.load %arg14[%c9, %c0_21] : memref<96x128xf32, #tpu.memory_space<vmem>>, vector<64x128xf32>
    %56 = vector.extract_strided_slice %37 {offsets = [2, 0], sizes = [1, 128], strides = [1, 1]} : vector<9x128xf32> to vector<1x128xf32>
    %57 = vector.shape_cast %56 : vector<1x128xf32> to vector<128xf32>
    %58 = vector.shape_cast %57 : vector<128xf32> to vector<1x128xf32>
    %59 = vector.broadcast %58 : vector<1x128xf32> to vector<64x128xf32>
    %60 = arith.mulf %55, %59 : vector<64x128xf32>
    %61 = vector.broadcast %36 : vector<64x1xf32> to vector<64x128xf32>
    %62 = arith.mulf %60, %61 : vector<64x128xf32>
    %63 = arith.addf %54, %62 : vector<64x128xf32>
    %c15 = arith.constant 15 : index
    %c0_22 = arith.constant 0 : index
    %64 = vector.load %arg14[%c15, %c0_22] : memref<96x128xf32, #tpu.memory_space<vmem>>, vector<64x128xf32>
    %65 = vector.extract_strided_slice %37 {offsets = [3, 0], sizes = [1, 128], strides = [1, 1]} : vector<9x128xf32> to vector<1x128xf32>
    %66 = vector.shape_cast %65 : vector<1x128xf32> to vector<128xf32>
    %67 = vector.shape_cast %66 : vector<128xf32> to vector<1x128xf32>
    %68 = vector.broadcast %67 : vector<1x128xf32> to vector<64x128xf32>
    %69 = arith.mulf %64, %68 : vector<64x128xf32>
    %70 = vector.broadcast %32 : vector<64x1xf32> to vector<64x128xf32>
    %71 = arith.mulf %69, %70 : vector<64x128xf32>
    %72 = arith.addf %63, %71 : vector<64x128xf32>
    %c16_23 = arith.constant 16 : index
    %c0_24 = arith.constant 0 : index
    %73 = vector.load %arg14[%c16_23, %c0_24] : memref<96x128xf32, #tpu.memory_space<vmem>>, vector<64x128xf32>
    %74 = vector.extract_strided_slice %37 {offsets = [4, 0], sizes = [1, 128], strides = [1, 1]} : vector<9x128xf32> to vector<1x128xf32>
    %75 = vector.shape_cast %74 : vector<1x128xf32> to vector<128xf32>
    %76 = vector.shape_cast %75 : vector<128xf32> to vector<1x128xf32>
    %77 = vector.broadcast %76 : vector<1x128xf32> to vector<64x128xf32>
    %78 = arith.mulf %73, %77 : vector<64x128xf32>
    %79 = arith.addf %72, %78 : vector<64x128xf32>
    %c17 = arith.constant 17 : index
    %c0_25 = arith.constant 0 : index
    %80 = vector.load %arg14[%c17, %c0_25] : memref<96x128xf32, #tpu.memory_space<vmem>>, vector<64x128xf32>
    %81 = vector.extract_strided_slice %37 {offsets = [5, 0], sizes = [1, 128], strides = [1, 1]} : vector<9x128xf32> to vector<1x128xf32>
    %82 = vector.shape_cast %81 : vector<1x128xf32> to vector<128xf32>
    %83 = vector.shape_cast %82 : vector<128xf32> to vector<1x128xf32>
    %84 = vector.broadcast %83 : vector<1x128xf32> to vector<64x128xf32>
    %85 = arith.mulf %80, %84 : vector<64x128xf32>
    %86 = vector.broadcast %36 : vector<64x1xf32> to vector<64x128xf32>
    %87 = arith.mulf %85, %86 : vector<64x128xf32>
    %88 = arith.addf %79, %87 : vector<64x128xf32>
    %c23 = arith.constant 23 : index
    %c0_26 = arith.constant 0 : index
    %89 = vector.load %arg14[%c23, %c0_26] : memref<96x128xf32, #tpu.memory_space<vmem>>, vector<64x128xf32>
    %90 = vector.extract_strided_slice %37 {offsets = [6, 0], sizes = [1, 128], strides = [1, 1]} : vector<9x128xf32> to vector<1x128xf32>
    %91 = vector.shape_cast %90 : vector<1x128xf32> to vector<128xf32>
    %92 = vector.shape_cast %91 : vector<128xf32> to vector<1x128xf32>
    %93 = vector.broadcast %92 : vector<1x128xf32> to vector<64x128xf32>
    %94 = arith.mulf %89, %93 : vector<64x128xf32>
    %95 = vector.broadcast %32 : vector<64x1xf32> to vector<64x128xf32>
    %96 = arith.mulf %94, %95 : vector<64x128xf32>
    %97 = arith.addf %88, %96 : vector<64x128xf32>
    %c24 = arith.constant 24 : index
    %c0_27 = arith.constant 0 : index
    %98 = vector.load %arg14[%c24, %c0_27] : memref<96x128xf32, #tpu.memory_space<vmem>>, vector<64x128xf32>
    %99 = vector.extract_strided_slice %37 {offsets = [7, 0], sizes = [1, 128], strides = [1, 1]} : vector<9x128xf32> to vector<1x128xf32>
    %100 = vector.shape_cast %99 : vector<1x128xf32> to vector<128xf32>
    %101 = vector.shape_cast %100 : vector<128xf32> to vector<1x128xf32>
    %102 = vector.broadcast %101 : vector<1x128xf32> to vector<64x128xf32>
    %103 = arith.mulf %98, %102 : vector<64x128xf32>
    %104 = arith.addf %97, %103 : vector<64x128xf32>
    %c25 = arith.constant 25 : index
    %c0_28 = arith.constant 0 : index
    %105 = vector.load %arg14[%c25, %c0_28] : memref<96x128xf32, #tpu.memory_space<vmem>>, vector<64x128xf32>
    %106 = vector.extract_strided_slice %37 {offsets = [8, 0], sizes = [1, 128], strides = [1, 1]} : vector<9x128xf32> to vector<1x128xf32>
    %107 = vector.shape_cast %106 : vector<1x128xf32> to vector<128xf32>
    %108 = vector.shape_cast %107 : vector<128xf32> to vector<1x128xf32>
    %109 = vector.broadcast %108 : vector<1x128xf32> to vector<64x128xf32>
    %110 = arith.mulf %105, %109 : vector<64x128xf32>
    %111 = vector.broadcast %36 : vector<64x1xf32> to vector<64x128xf32>
    %112 = arith.mulf %110, %111 : vector<64x128xf32>
    %113 = arith.addf %104, %112 : vector<64x128xf32>
    %c0_29 = arith.constant 0 : index
    %c0_30 = arith.constant 0 : index
    %114 = vector.load %arg6[%c0_29, %c0_30] : memref<1x128xf32, #tpu.memory_space<vmem>>, vector<1x128xf32>
    %c0_31 = arith.constant 0 : index
    %c0_32 = arith.constant 0 : index
    %115 = vector.load %arg5[%c0_31, %c0_32] : memref<1x128xf32, #tpu.memory_space<vmem>>, vector<1x128xf32>
    %116 = vector.broadcast %115 : vector<1x128xf32> to vector<64x128xf32>
    %117 = arith.addf %113, %116 : vector<64x128xf32>
    %118 = vector.broadcast %114 : vector<1x128xf32> to vector<64x128xf32>
    %119 = arith.mulf %118, %117 : vector<64x128xf32>
    %120 = arith.addf %119, %6 : vector<64x128xf32>
    %c0_33 = arith.constant 0 : index
    %c0_34 = arith.constant 0 : index
    %121 = vector.load %arg7[%c0_33, %c0_34] : memref<128x128xf32, #tpu.memory_space<vmem>>, vector<128x128xf32>
    %cst_35 = arith.constant dense<0.000000e+00> : vector<64x128xf32>
    %122 = tpu.matmul %120, %121, %cst_35 {dimension_numbers = #tpu.dot_dimension_numbers<[1], [0], [0], [1], [0, 0, 1, 1], [], []>} : vector<64x128xf32>, vector<128x128xf32>, vector<64x128xf32> -> vector<64x128xf32>
    %c0_36 = arith.constant 0 : index
    %c0_37 = arith.constant 0 : index
    %123 = vector.load %arg8[%c0_36, %c0_37] : memref<1x128xf32, #tpu.memory_space<vmem>>, vector<1x128xf32>
    %124 = vector.broadcast %123 : vector<1x128xf32> to vector<64x128xf32>
    %125 = arith.addf %122, %124 : vector<64x128xf32>
    %cst_38 = arith.constant dense<0.000000e+00> : vector<128xf32>
    %126 = vector.multi_reduction <add>, %125, %cst_38 [0] : vector<64x128xf32> to vector<128xf32>
    %127 = vector.shape_cast %126 : vector<128xf32> to vector<1x128xf32>
    %cst_39 = arith.constant 1.562500e-02 : f32
    %128 = vector.broadcast %cst_39 : f32 to vector<1x128xf32>
    %129 = arith.mulf %127, %128 : vector<1x128xf32>
    %c0_40 = arith.constant 0 : index
    %c0_41 = arith.constant 0 : index
    %130 = vector.load %arg9[%c0_40, %c0_41] : memref<128x32xf32, #tpu.memory_space<vmem>>, vector<128x32xf32>
    %cst_42 = arith.constant dense<0.000000e+00> : vector<1x32xf32>
    %131 = tpu.matmul %129, %130, %cst_42 {dimension_numbers = #tpu.dot_dimension_numbers<[1], [0], [0], [1], [0, 0, 1, 1], [], []>} : vector<1x128xf32>, vector<128x32xf32>, vector<1x32xf32> -> vector<1x32xf32>
    %c0_43 = arith.constant 0 : index
    %c0_44 = arith.constant 0 : index
    %132 = vector.load %arg10[%c0_43, %c0_44] : memref<1x32xf32, #tpu.memory_space<vmem>>, vector<1x32xf32>
    %133 = arith.addf %131, %132 : vector<1x32xf32>
    %cst_45 = arith.constant 0.000000e+00 : f32
    %134 = vector.broadcast %cst_45 : f32 to vector<1x32xf32>
    %135 = arith.maximumf %133, %134 : vector<1x32xf32>
    %c0_46 = arith.constant 0 : index
    %c0_47 = arith.constant 0 : index
    %136 = vector.load %arg11[%c0_46, %c0_47] : memref<32x128xf32, #tpu.memory_space<vmem>>, vector<32x128xf32>
    %cst_48 = arith.constant dense<0.000000e+00> : vector<1x128xf32>
    %137 = tpu.matmul %135, %136, %cst_48 {dimension_numbers = #tpu.dot_dimension_numbers<[1], [0], [0], [1], [0, 0, 1, 1], [], []>} : vector<1x32xf32>, vector<32x128xf32>, vector<1x128xf32> -> vector<1x128xf32>
    %c0_49 = arith.constant 0 : index
    %c0_50 = arith.constant 0 : index
    %138 = vector.load %arg12[%c0_49, %c0_50] : memref<1x128xf32, #tpu.memory_space<vmem>>, vector<1x128xf32>
    %139 = arith.addf %137, %138 : vector<1x128xf32>
    %140 = arith.negf %139 : vector<1x128xf32>
    %141 = math.exp %140 : vector<1x128xf32>
    %cst_51 = arith.constant 1.000000e+00 : f32
    %142 = vector.broadcast %cst_51 : f32 to vector<1x128xf32>
    %143 = arith.addf %142, %141 : vector<1x128xf32>
    %144 = arith.divf %142, %143 : vector<1x128xf32>
    %145 = vector.broadcast %144 : vector<1x128xf32> to vector<64x128xf32>
    %146 = arith.mulf %125, %145 : vector<64x128xf32>
    %c0_52 = arith.constant 0 : index
    %c0_53 = arith.constant 0 : index
    %c0_54 = arith.constant 0 : index
    %147 = vector.load %arg13[%c0_52, %c0_53, %c0_54] : memref<1x64x128xf32, #tpu.memory_space<vmem>>, vector<1x64x128xf32>
    %148 = vector.shape_cast %147 : vector<1x64x128xf32> to vector<64x128xf32>
    %149 = vector.shape_cast %146 : vector<64x128xf32> to vector<1x64x128xf32>
    tpu.vector_store %arg13[%c0_52, %c0_53, %c0_54], %149 {strides = array<i32>} : memref<1x64x128xf32, #tpu.memory_space<vmem>>, vector<1x64x128xf32>,
    return
  }
  func.func @transform_0(%arg0: i32) -> (i32, i32, i32) {
    %c0_i32 = arith.constant 0 : i32
    %c0_i32_0 = arith.constant 0 : i32
    %c0_i32_1 = arith.constant 0 : i32
    return %arg0, %c0_i32, %c0_i32_0 : i32, i32, i32
  }
  func.func @transform_1(%arg0: i32) -> (i32, i32) {
    %c0_i32 = arith.constant 0 : i32
    %c0_i32_0 = arith.constant 0 : i32
    %c0_i32_1 = arith.constant 0 : i32
    return %c0_i32, %c0_i32_0 : i32, i32
  }
  func.func @transform_2(%arg0: i32) -> (i32, i32) {
    %c0_i32 = arith.constant 0 : i32
    %c0_i32_0 = arith.constant 0 : i32
    %c0_i32_1 = arith.constant 0 : i32
    return %c0_i32, %c0_i32_0 : i32, i32
  }
  func.func @transform_3(%arg0: i32) -> (i32, i32) {
    %c0_i32 = arith.constant 0 : i32
    %c0_i32_0 = arith.constant 0 : i32
    %c0_i32_1 = arith.constant 0 : i32
    return %c0_i32, %c0_i32_0 : i32, i32
  }
  func.func @transform_4(%arg0: i32) -> (i32, i32) {
    %c0_i32 = arith.constant 0 : i32
    %c0_i32_0 = arith.constant 0 : i32
    %c0_i32_1 = arith.constant 0 : i32
    return %c0_i32, %c0_i32_0 : i32, i32
  }
  func.func @transform_5(%arg0: i32) -> (i32, i32) {
    %c0_i32 = arith.constant 0 : i32
    %c0_i32_0 = arith.constant 0 : i32
    %c0_i32_1 = arith.constant 0 : i32
    return %c0_i32, %c0_i32_0 : i32, i32
  }
  func.func @transform_6(%arg0: i32) -> (i32, i32) {
    %c0_i32 = arith.constant 0 : i32
    %c0_i32_0 = arith.constant 0 : i32
    %c0_i32_1 = arith.constant 0 : i32
    return %c0_i32, %c0_i32_0 : i32, i32
  }
  func.func @transform_7(%arg0: i32) -> (i32, i32) {
    %c0_i32 = arith.constant 0 : i32
    %c0_i32_0 = arith.constant 0 : i32
    %c0_i32_1 = arith.constant 0 : i32
    return %c0_i32, %c0_i32_0 : i32, i32
  }
  func.func @transform_8(%arg0: i32) -> (i32, i32) {
    %c0_i32 = arith.constant 0 : i32
    %c0_i32_0 = arith.constant 0 : i32
    %c0_i32_1 = arith.constant 0 : i32
    return %c0_i32, %c0_i32_0 : i32, i32
  }
  func.func @transform_9(%arg0: i32) -> (i32, i32) {
    %c0_i32 = arith.constant 0 : i32
    %c0_i32_0 = arith.constant 0 : i32
    %c0_i32_1 = arith.constant 0 : i32
    return %c0_i32, %c0_i32_0 : i32, i32
  }
  func.func @transform_10(%arg0: i32) -> (i32, i32) {
    %c0_i32 = arith.constant 0 : i32
    %c0_i32_0 = arith.constant 0 : i32
    %c0_i32_1 = arith.constant 0 : i32
    return %c0_i32, %c0_i32_0 : i32, i32
  }
  func.func @transform_11(%arg0: i32) -> (i32, i32) {
    %c0_i32 = arith.constant 0 : i32
    %c0_i32_0 = arith.constant 0 : i32
    %c0_i32_1 = arith.constant 0 : i32
    return %c0_i32, %c0_i32_0 : i32, i32
  }
  func.func @transform_12(%arg0: i32) -> (i32, i32, i32) {
    %c0_i32 = arith.constant 0 : i32
    %c0_i32_0 = arith.constant 0 : i32
    %c0_i32_1 = arith.constant 0 : i32
    return %arg0, %c0_i32, %c0_i32_0 : i32, i32, i32
  }
}

</mosaic_0001>

<llo_original>
// kernel: semlp_forward.1
$region0: #{semlp_forward.1}
  #allocation0 [shape = 'u32[]', space=smem, size = 0x4, offset = 0x4, fixed_abs, tag = 'smem constant byte address 0x4 - core index']
  #allocation1 [shape = 'u32[72,128]{1,0:T(1,128)}', space=vmem, size = 0x9000, scoped, tag = 'internal scratch']
  #allocation2 [shape = 'f32[96,128]{1,0:T(8,128)}', space=vmem, size = 0xc000, scoped, tag = 'scratch operand']
  %s0 = inlined_call_operand.vmem [shape: f32[2,64,128], index: 0, kind: input, shape index: {}]
  %s1 = inlined_call_operand.vmem [shape: f32[128,128], index: 1, kind: input, shape index: {}]
  %s2 = inlined_call_operand.vmem [shape: f32[1,128], index: 2, kind: input, shape index: {}]
  %s3 = inlined_call_operand.vmem [shape: f32[9,128], index: 3, kind: input, shape index: {}]
  %s4 = inlined_call_operand.vmem [shape: f32[1,128], index: 4, kind: input, shape index: {}]
  %s5 = inlined_call_operand.vmem [shape: f32[1,128], index: 5, kind: input, shape index: {}]
  %s6 = inlined_call_operand.vmem [shape: f32[128,128], index: 6, kind: input, shape index: {}]
  %s7 = inlined_call_operand.vmem [shape: f32[1,128], index: 7, kind: input, shape index: {}]
  %s8 = inlined_call_operand.vmem [shape: f32[128,32], index: 8, kind: input, shape index: {}]
  %s9 = inlined_call_operand.vmem [shape: f32[1,32], index: 9, kind: input, shape index: {}]
  %s10 = inlined_call_operand.vmem [shape: f32[32,128], index: 10, kind: input, shape index: {}]
  %s11 = inlined_call_operand.vmem [shape: f32[1,128], index: 11, kind: input, shape index: {}]
  %s12 = inlined_call_operand.hbm [shape: f32[2,64,128], index: 12, kind: output, shape index: {}]
  %s13 = sld [smem:[#allocation0]]
  $region81: #{semlp_forward.1} parent=0
    _
  %s15 = ssub.s32 1, %s13
  %s16 = scalar_select 0, %s15, %s13
  $region1: #{semlp_forward.1} parent=0
    #allocation3 [shape = 'u8[65536]{0}', space=vmem, size = 0x10000, scoped, tag = 'output window, operand 0']
    #allocation4 [shape = 's32[2]{0}', space=sflag, size = 0x8, scoped, tag = 'scoped memory for semlp_forward.1']
    %17 = vsyncpa [#allocation4], 0
    %s18 = scalar_lea.sflag [#allocation4], 1
    %19 = vsyncpa %s18, 0
    loop: start=0, step=1, limit=4
    $region2: #{semlp_forward.1} parent=1 // loop_pre_header
      _
    $region3: #{semlp_forward.1} parent=1 // loop_header
      %s21 = sphi 0, %s25
      %p22 = scmp.ge.s32.totalorder %s21, 4
      %s31 = sphi 0, %s33
      %s34 = sphi 0, %s31
      %s35 = sphi 0, %s34
      %s51 = sphi 0, %s35
      %s55 = sphi 0, %s55
      %s57 = sphi 0, %s55
      %s58 = sphi 0, %s57
      %s72 = sphi 0, %s58
      %s76 = sphi 0, %s76
      %s78 = sphi 0, %s76
      %s79 = sphi 0, %s78
      %s93 = sphi 0, %s79
      %s97 = sphi 0, %s97
      %s99 = sphi 0, %s97
      %s100 = sphi 0, %s99
      %s114 = sphi 0, %s100
      %s118 = sphi 0, %s118
      %s120 = sphi 0, %s118
      %s121 = sphi 0, %s120
      %s135 = sphi 0, %s121
      %s139 = sphi 0, %s139
      %s141 = sphi 0, %s139
      %s142 = sphi 0, %s141
      %s156 = sphi 0, %s142
      %s160 = sphi 0, %s160
      %s162 = sphi 0, %s160
      %s163 = sphi 0, %s162
      %s177 = sphi 0, %s163
      %s181 = sphi 0, %s181
      %s183 = sphi 0, %s181
      %s184 = sphi 0, %s183
      %s198 = sphi 0, %s184
      %s202 = sphi 0, %s202
      %s204 = sphi 0, %s202
      %s205 = sphi 0, %s204
      %s219 = sphi 0, %s205
      %s223 = sphi 0, %s223
      %s225 = sphi 0, %s223
      %s226 = sphi 0, %s225
      %s240 = sphi 0, %s226
      %s244 = sphi 0, %s244
      %s246 = sphi 0, %s244
      %s247 = sphi 0, %s246
      %s261 = sphi 0, %s247
      %s265 = sphi 0, %s265
      %s267 = sphi 0, %s265
      %s268 = sphi 0, %s267
      %s282 = sphi 0, %s268
      %s288 = sphi 0, %s290
      %s291 = sphi 0, %s288
      %s292 = sphi 0, %s291
      %s308 = sphi 0, %s292
    $region4: #{semlp_forward.1} parent=1 // loop_header_branch
      %24 = sbr.rel (%p22) target = $region8
    $region5: #{semlp_forward.1} parent=1 // loop_body
      %s26 = ssub.s32 %s21, 1
      %s27 = ssub.s32 %s21, 2
      %s28 = sadd.s32 %s21, 1
      %s29 = ssub.s32 %s21, %s28
      %p30 = scmp.eq.s32.totalorder %s29, 0
      %s32 = sadd.s32 %s31, 1
      %s33 = scalar_select %p30, %s31, %s32
      %p36 = pneg %p30
      %p37 = scmp.eq.s32.totalorder %s21, 1
      %p38 = por %p36, %p37
      %p39 = scmp.ne.s32.totalorder %s31, %s34
      %p40 = scmp.eq.s32.totalorder %s21, 0
      %p41 = por %p39, %p40
      %p42 = scmp.ne.s32.totalorder %s31, %s34
      %p43 = scmp.eq.s32.totalorder %s26, 1
      %p44 = por %p42, %p43
      %p45 = scmp.ne.s32.totalorder %s34, %s35
      %p46 = scmp.eq.s32.totalorder %s26, 0
      %p47 = por %p45, %p46
      %p48 = scmp.ne.s32.totalorder %s34, %s35
      %p49 = scmp.eq.s32.totalorder %s27, 1
      %p50 = por %p48, %p49
      %p52 = scmp.ne.s32.totalorder %s35, %s51
      %p53 = scmp.eq.s32.totalorder %s27, 0
      %p54 = por %p52, %p53
      %s56 = sadd.s32 %s55, 1
      %p59 = scmp.eq.s32.totalorder %s21, 1
      %p60 = scmp.ne.s32.totalorder %s55, %s57
      %p61 = scmp.eq.s32.totalorder %s21, 0
      %p62 = por %p60, %p61
      %p63 = scmp.ne.s32.totalorder %s55, %s57
      %p64 = scmp.eq.s32.totalorder %s26, 1
      %p65 = por %p63, %p64
      %p66 = scmp.ne.s32.totalorder %s57, %s58
      %p67 = scmp.eq.s32.totalorder %s26, 0
      %p68 = por %p66, %p67
      %p69 = scmp.ne.s32.totalorder %s57, %s58
      %p70 = scmp.eq.s32.totalorder %s27, 1
      %p71 = por %p69, %p70
      %p73 = scmp.ne.s32.totalorder %s58, %s72
      %p74 = scmp.eq.s32.totalorder %s27, 0
      %p75 = por %p73, %p74
      %s77 = sadd.s32 %s76, 1
      %p80 = scmp.eq.s32.totalorder %s21, 1
      %p81 = scmp.ne.s32.totalorder %s76, %s78
      %p82 = scmp.eq.s32.totalorder %s21, 0
      %p83 = por %p81, %p82
      %p84 = scmp.ne.s32.totalorder %s76, %s78
      %p85 = scmp.eq.s32.totalorder %s26, 1
      %p86 = por %p84, %p85
      %p87 = scmp.ne.s32.totalorder %s78, %s79
      %p88 = scmp.eq.s32.totalorder %s26, 0
      %p89 = por %p87, %p88
      %p90 = scmp.ne.s32.totalorder %s78, %s79
      %p91 = scmp.eq.s32.totalorder %s27, 1
      %p92 = por %p90, %p91
      %p94 = scmp.ne.s32.totalorder %s79, %s93
      %p95 = scmp.eq.s32.totalorder %s27, 0
      %p96 = por %p94, %p95
      %s98 = sadd.s32 %s97, 1
      %p101 = scmp.eq.s32.totalorder %s21, 1
      %p102 = scmp.ne.s32.totalorder %s97, %s99
      %p103 = scmp.eq.s32.totalorder %s21, 0
      %p104 = por %p102, %p103
      %p105 = scmp.ne.s32.totalorder %s97, %s99
      %p106 = scmp.eq.s32.totalorder %s26, 1
      %p107 = por %p105, %p106
      %p108 = scmp.ne.s32.totalorder %s99, %s100
      %p109 = scmp.eq.s32.totalorder %s26, 0
      %p110 = por %p108, %p109
      %p111 = scmp.ne.s32.totalorder %s99, %s100
      %p112 = scmp.eq.s32.totalorder %s27, 1
      %p113 = por %p111, %p112
      %p115 = scmp.ne.s32.totalorder %s100, %s114
      %p116 = scmp.eq.s32.totalorder %s27, 0
      %p117 = por %p115, %p116
      %s119 = sadd.s32 %s118, 1
      %p122 = scmp.eq.s32.totalorder %s21, 1
      %p123 = scmp.ne.s32.totalorder %s118, %s120
      %p124 = scmp.eq.s32.totalorder %s21, 0
      %p125 = por %p123, %p124
      %p126 = scmp.ne.s32.totalorder %s118, %s120
      %p127 = scmp.eq.s32.totalorder %s26, 1
      %p128 = por %p126, %p127
      %p129 = scmp.ne.s32.totalorder %s120, %s121
      %p130 = scmp.eq.s32.totalorder %s26, 0
      %p131 = por %p129, %p130
      %p132 = scmp.ne.s32.totalorder %s120, %s121
      %p133 = scmp.eq.s32.totalorder %s27, 1
      %p134 = por %p132, %p133
      %p136 = scmp.ne.s32.totalorder %s121, %s135
      %p137 = scmp.eq.s32.totalorder %s27, 0
      %p138 = por %p136, %p137
      %s140 = sadd.s32 %s139, 1
      %p143 = scmp.eq.s32.totalorder %s21, 1
      %p144 = scmp.ne.s32.totalorder %s139, %s141
      %p145 = scmp.eq.s32.totalorder %s21, 0
      %p146 = por %p144, %p145
      %p147 = scmp.ne.s32.totalorder %s139, %s141
      %p148 = scmp.eq.s32.totalorder %s26, 1
      %p149 = por %p147, %p148
      %p150 = scmp.ne.s32.totalorder %s141, %s142
      %p151 = scmp.eq.s32.totalorder %s26, 0
      %p152 = por %p150, %p151
      %p153 = scmp.ne.s32.totalorder %s141, %s142
      %p154 = scmp.eq.s32.totalorder %s27, 1
      %p155 = por %p153, %p154
      %p157 = scmp.ne.s32.totalorder %s142, %s156
      %p158 = scmp.eq.s32.totalorder %s27, 0
      %p159 = por %p157, %p158
      %s161 = sadd.s32 %s160, 1
      %p164 = scmp.eq.s32.totalorder %s21, 1
      %p165 = scmp.ne.s32.totalorder %s160, %s162
      %p166 = scmp.eq.s32.totalorder %s21, 0
      %p167 = por %p165, %p166
      %p168 = scmp.ne.s32.totalorder %s160, %s162
      %p169 = scmp.eq.s32.totalorder %s26, 1
      %p170 = por %p168, %p169
      %p171 = scmp.ne.s32.totalorder %s162, %s163
      %p172 = scmp.eq.s32.totalorder %s26, 0
      %p173 = por %p171, %p172
      %p174 = scmp.ne.s32.totalorder %s162, %s163
      %p175 = scmp.eq.s32.totalorder %s27, 1
      %p176 = por %p174, %p175
      %p178 = scmp.ne.s32.totalorder %s163, %s177
      %p179 = scmp.eq.s32.totalorder %s27, 0
      %p180 = por %p178, %p179
      %s182 = sadd.s32 %s181, 1
      %p185 = scmp.eq.s32.totalorder %s21, 1
      %p186 = scmp.ne.s32.totalorder %s181, %s183
      %p187 = scmp.eq.s32.totalorder %s21, 0
      %p188 = por %p186, %p187
      %p189 = scmp.ne.s32.totalorder %s181, %s183
      %p190 = scmp.eq.s32.totalorder %s26, 1
      %p191 = por %p189, %p190
      %p192 = scmp.ne.s32.totalorder %s183, %s184
      %p193 = scmp.eq.s32.totalorder %s26, 0
      %p194 = por %p192, %p193
      %p195 = scmp.ne.s32.totalorder %s183, %s184
      %p196 = scmp.eq.s32.totalorder %s27, 1
      %p197 = por %p195, %p196
      %p199 = scmp.ne.s32.totalorder %s184, %s198
      %p200 = scmp.eq.s32.totalorder %s27, 0
      %p201 = por %p199, %p200
      %s203 = sadd.s32 %s202, 1
      %p206 = scmp.eq.s32.totalorder %s21, 1
      %p207 = scmp.ne.s32.totalorder %s202, %s204
      %p208 = scmp.eq.s32.totalorder %s21, 0
      %p209 = por %p207, %p208
      %p210 = scmp.ne.s32.totalorder %s202, %s204
      %p211 = scmp.eq.s32.totalorder %s26, 1
      %p212 = por %p210, %p211
      %p213 = scmp.ne.s32.totalorder %s204, %s205
      %p214 = scmp.eq.s32.totalorder %s26, 0
      %p215 = por %p213, %p214
      %p216 = scmp.ne.s32.totalorder %s204, %s205
      %p217 = scmp.eq.s32.totalorder %s27, 1
      %p218 = por %p216, %p217
      %p220 = scmp.ne.s32.totalorder %s205, %s219
      %p221 = scmp.eq.s32.totalorder %s27, 0
      %p222 = por %p220, %p221
      %s224 = sadd.s32 %s223, 1
      %p227 = scmp.eq.s32.totalorder %s21, 1
      %p228 = scmp.ne.s32.totalorder %s223, %s225
      %p229 = scmp.eq.s32.totalorder %s21, 0
      %p230 = por %p228, %p229
      %p231 = scmp.ne.s32.totalorder %s223, %s225
      %p232 = scmp.eq.s32.totalorder %s26, 1
      %p233 = por %p231, %p232
      %p234 = scmp.ne.s32.totalorder %s225, %s226
      %p235 = scmp.eq.s32.totalorder %s26, 0
      %p236 = por %p234, %p235
      %p237 = scmp.ne.s32.totalorder %s225, %s226
      %p238 = scmp.eq.s32.totalorder %s27, 1
      %p239 = por %p237, %p238
      %p241 = scmp.ne.s32.totalorder %s226, %s240
      %p242 = scmp.eq.s32.totalorder %s27, 0
      %p243 = por %p241, %p242
      %s245 = sadd.s32 %s244, 1
      %p248 = scmp.eq.s32.totalorder %s21, 1
      %p249 = scmp.ne.s32.totalorder %s244, %s246
      %p250 = scmp.eq.s32.totalorder %s21, 0
      %p251 = por %p249, %p250
      %p252 = scmp.ne.s32.totalorder %s244, %s246
      %p253 = scmp.eq.s32.totalorder %s26, 1
      %p254 = por %p252, %p253
      %p255 = scmp.ne.s32.totalorder %s246, %s247
      %p256 = scmp.eq.s32.totalorder %s26, 0
      %p257 = por %p255, %p256
      %p258 = scmp.ne.s32.totalorder %s246, %s247
      %p259 = scmp.eq.s32.totalorder %s27, 1
      %p260 = por %p258, %p259
      %p262 = scmp.ne.s32.totalorder %s247, %s261
      %p263 = scmp.eq.s32.totalorder %s27, 0
      %p264 = por %p262, %p263
      %s266 = sadd.s32 %s265, 1
      %p269 = scmp.eq.s32.totalorder %s21, 1
      %p270 = scmp.ne.s32.totalorder %s265, %s267
      %p271 = scmp.eq.s32.totalorder %s21, 0
      %p272 = por %p270, %p271
      %p273 = scmp.ne.s32.totalorder %s265, %s267
      %p274 = scmp.eq.s32.totalorder %s26, 1
      %p275 = por %p273, %p274
      %p276 = scmp.ne.s32.totalorder %s267, %s268
      %p277 = scmp.eq.s32.totalorder %s26, 0
      %p278 = por %p276, %p277
      %p279 = scmp.ne.s32.totalorder %s267, %s268
      %p280 = scmp.eq.s32.totalorder %s27, 1
      %p281 = por %p279, %p280
      %p283 = scmp.ne.s32.totalorder %s268, %s282
      %p284 = scmp.eq.s32.totalorder %s27, 0
      %p285 = por %p283, %p284
      %s286 = ssub.s32 %s21, %s28
      %p287 = scmp.eq.s32.totalorder %s286, 0
      %s289 = sadd.s32 %s288, 1
      %s290 = scalar_select %p287, %s288, %s289
      %p293 = pneg %p287
      %p294 = scmp.eq.s32.totalorder %s21, 1
      %p295 = por %p293, %p294
      %p296 = scmp.ne.s32.totalorder %s288, %s291
      %p297 = scmp.eq.s32.totalorder %s21, 0
      %p298 = por %p296, %p297
      %p299 = scmp.ne.s32.totalorder %s288, %s291
      %p300 = scmp.eq.s32.totalorder %s26, 1
      %p301 = por %p299, %p300
      %p302 = scmp.ne.s32.totalorder %s291, %s292
      %p303 = scmp.eq.s32.totalorder %s26, 0
      %p304 = por %p302, %p303
      %p305 = scmp.ne.s32.totalorder %s291, %s292
      %p306 = scmp.eq.s32.totalorder %s27, 1
      %p307 = por %p305, %p306
      %p309 = scmp.ne.s32.totalorder %s292, %s308
      %p310 = scmp.eq.s32.totalorder %s27, 0
      %p311 = por %p309, %p310
      %p312 = scmp.le.s32.totalorder 1, %s21
      %p313 = scmp.lt.s32.totalorder %s21, 3
      %p314 = pnand %p312, %p313
      %p315 = pneg %p314
      // Predicated region
      $region9: #{semlp_forward.1} parent=5 // pred_check
        _
      $region10: #{semlp_forward.1} parent=5 // pred_check_branch
        %317 = sbr.rel (%p314) target = $region12
      $region11: #{semlp_forward.1} parent=5 // pred_region
        %s318 = ssub.s32 %s21, 1
        // Predicated region
        $region13: #{semlp_forward.1} parent=11 // pred_check
          %p319 = pneg %p68
        $region14: #{semlp_forward.1} parent=11 // pred_check_branch
          %321 = sbr.rel (%p319) target = $region16
        $region15: #{semlp_forward.1} parent=11 // pred_region
          _
        $region16: #{semlp_forward.1} parent=11 // pred_fallthru
          _
        // Predicated region
        $region17: #{semlp_forward.1} parent=11 // pred_check
          %p322 = pneg %p89
        $region18: #{semlp_forward.1} parent=11 // pred_check_branch
          %324 = sbr.rel (%p322) target = $region20
        $region19: #{semlp_forward.1} parent=11 // pred_region
          _
        $region20: #{semlp_forward.1} parent=11 // pred_fallthru
          _
        // Predicated region
        $region21: #{semlp_forward.1} parent=11 // pred_check
          %p325 = pneg %p110
        $region22: #{semlp_forward.1} parent=11 // pred_check_branch
          %327 = sbr.rel (%p325) target = $region24
        $region23: #{semlp_forward.1} parent=11 // pred_region
          _
        $region24: #{semlp_forward.1} parent=11 // pred_fallthru
          _
        // Predicated region
        $region25: #{semlp_forward.1} parent=11 // pred_check
          %p328 = pneg %p131
        $region26: #{semlp_forward.1} parent=11 // pred_check_branch
          %330 = sbr.rel (%p328) target = $region28
        $region27: #{semlp_forward.1} parent=11 // pred_region
          _
        $region28: #{semlp_forward.1} parent=11 // pred_fallthru
          _
        // Predicated region
        $region29: #{semlp_forward.1} parent=11 // pred_check
          %p331 = pneg %p152
        $region30: #{semlp_forward.1} parent=11 // pred_check_branch
          %333 = sbr.rel (%p331) target = $region32
        $region31: #{semlp_forward.1} parent=11 // pred_region
          _
        $region32: #{semlp_forward.1} parent=11 // pred_fallthru
          _
        // Predicated region
        $region33: #{semlp_forward.1} parent=11 // pred_check
          %p334 = pneg %p173
        $region34: #{semlp_forward.1} parent=11 // pred_check_branch
          %336 = sbr.rel (%p334) target = $region36
        $region35: #{semlp_forward.1} parent=11 // pred_region
          _
        $region36: #{semlp_forward.1} parent=11 // pred_fallthru
          _
        // Predicated region
        $region37: #{semlp_forward.1} parent=11 // pred_check
          %p337 = pneg %p194
        $region38: #{semlp_forward.1} parent=11 // pred_check_branch
          %339 = sbr.rel (%p337) target = $region40
        $region39: #{semlp_forward.1} parent=11 // pred_region
          _
        $region40: #{semlp_forward.1} parent=11 // pred_fallthru
          _
        // Predicated region
        $region41: #{semlp_forward.1} parent=11 // pred_check
          %p340 = pneg %p215
        $region42: #{semlp_forward.1} parent=11 // pred_check_branch
          %342 = sbr.rel (%p340) target = $region44
        $region43: #{semlp_forward.1} parent=11 // pred_region
          _
        $region44: #{semlp_forward.1} parent=11 // pred_fallthru
          _
        // Predicated region
        $region45: #{semlp_forward.1} parent=11 // pred_check
          %p343 = pneg %p236
        $region46: #{semlp_forward.1} parent=11 // pred_check_branch
          %345 = sbr.rel (%p343) target = $region48
        $region47: #{semlp_forward.1} parent=11 // pred_region
          _
        $region48: #{semlp_forward.1} parent=11 // pred_fallthru
          _
        // Predicated region
        $region49: #{semlp_forward.1} parent=11 // pred_check
          %p346 = pneg %p257
        $region50: #{semlp_forward.1} parent=11 // pred_check_branch
          %348 = sbr.rel (%p346) target = $region52
        $region51: #{semlp_forward.1} parent=11 // pred_region
          _
        $region52: #{semlp_forward.1} parent=11 // pred_fallthru
          _
        // Predicated region
        $region53: #{semlp_forward.1} parent=11 // pred_check
          %p349 = pneg %p278
        $region54: #{semlp_forward.1} parent=11 // pred_check_branch
          %351 = sbr.rel (%p349) target = $region56
        $region55: #{semlp_forward.1} parent=11 // pred_region
          _
        $region56: #{semlp_forward.1} parent=11 // pred_fallthru
          _
      $region12: #{semlp_forward.1} parent=5 // pred_fallthru
        _
      %p352 = scmp.lt.s32.totalorder %s21, 2
      // Predicated region
      $region57: #{semlp_forward.1} parent=5 // pred_check
        %p353 = pneg %p352
      $region58: #{semlp_forward.1} parent=5 // pred_check_branch
        %355 = sbr.rel (%p353) target = $region60
      $region59: #{semlp_forward.1} parent=5 // pred_region
        // Predicated region
        $region61: #{semlp_forward.1} parent=59 // pred_check
          %p356 = pneg %p41
        $region62: #{semlp_forward.1} parent=59 // pred_check_branch
          %358 = sbr.rel (%p356) target = $region64
        $region63: #{semlp_forward.1} parent=59 // pred_region
          %p359 = scmp.lt.s32.totalorder %s21, 1
          %s360 = scalar_select %p359, %s21, 1
          %s361 = smul.addr %s360, 8
          %s362 = smul.addr %s361, 8
          %s363 = scalar_lea.vmem %s0, %s362
        $region64: #{semlp_forward.1} parent=59 // pred_fallthru
          _
      $region60: #{semlp_forward.1} parent=5 // pred_fallthru
        _
      %p364 = scmp.le.s32.totalorder 1, %s21
      %p365 = scmp.lt.s32.totalorder %s21, 3
      %p366 = pnand %p364, %p365
      %p367 = pneg %p366
      // Predicated region
      $region65: #{semlp_forward.1} parent=5 // pred_check
        _
      $region66: #{semlp_forward.1} parent=5 // pred_check_branch
        %369 = sbr.rel (%p366) target = $region68
      $region67: #{semlp_forward.1} parent=5 // pred_region
        %s370 = ssub.s32 %s21, 1
        %p371 = scmp.lt.s32.totalorder %s26, 1
        %s372 = scalar_select %p371, %s26, 1
        %s373 = smul.addr %s372, 8
        %s374 = smul.addr %s373, 8
        %s375 = scalar_lea.vmem %s0, %s374
        %p376 = pneg %p47
        %p377 = pneg %p44
        %p378 = pneg %p68
        %p379 = pneg %p65
        %p380 = pneg %p89
        %p381 = pneg %p86
        %p382 = pneg %p110
        %p383 = pneg %p107
        %p384 = pneg %p131
        %p385 = pneg %p128
        %p386 = pneg %p152
        %p387 = pneg %p149
        %p388 = pneg %p173
        %p389 = pneg %p170
        %p390 = pneg %p194
        %p391 = pneg %p191
        %p392 = pneg %p215
        %p393 = pneg %p212
        %p394 = pneg %p236
        %p395 = pneg %p233
        %p396 = pneg %p257
        %p397 = pneg %p254
        %p398 = pneg %p278
        %p399 = pneg %p275
        %p400 = pneg %p304
        %p401 = pneg %p301
        %s402 = sand.u32 %s291, 1
        %s403 = scalar_lea.sflag [#allocation4], %s402
        %s404 = sand.u32 %s291, 1
        %s405 = smul.addr %s404, 64
        %s406 = scalar_lea.vmem [#allocation3], %s405
        %p407 = scmp.lt.s32.totalorder %s26, 1
        %s408 = scalar_select %p407, %s26, 1
        %s409 = smul.addr %s408, 8
        %s410 = smul.addr %s409, 8
        %s411 = scalar_lea.vmem %s0, %s410
        %v412 = vld [vmem:[%s411] sm:$0xff]
        %v413 = vld [vmem:[%s411 + $0x8] sm:$0xff]
        %v414 = vld [vmem:[%s411 + $0x10] sm:$0xff]
        %v415 = vld [vmem:[%s411 + $0x18] sm:$0xff]
        %v416 = vld [vmem:[%s411 + $0x20] sm:$0xff]
        %v417 = vld [vmem:[%s411 + $0x28] sm:$0xff]
        %v418 = vld [vmem:[%s411 + $0x30] sm:$0xff]
        %v419 = vld [vmem:[%s411 + $0x38] sm:$0xff]
        %v420 = vld [vmem:[%s1] sm:$0xff]
        %v421 = vld [vmem:[%s1 + $0x8] sm:$0xff]
        %v422 = vld [vmem:[%s1 + $0x10] sm:$0xff]
        %v423 = vld [vmem:[%s1 + $0x18] sm:$0xff]
        %v424 = vld [vmem:[%s1 + $0x20] sm:$0xff]
        %v425 = vld [vmem:[%s1 + $0x28] sm:$0xff]
        %v426 = vld [vmem:[%s1 + $0x30] sm:$0xff]
        %v427 = vld [vmem:[%s1 + $0x38] sm:$0xff]
        %v428 = vld [vmem:[%s1 + $0x40] sm:$0xff]
        %v429 = vld [vmem:[%s1 + $0x48] sm:$0xff]
        %v430 = vld [vmem:[%s1 + $0x50] sm:$0xff]
        %v431 = vld [vmem:[%s1 + $0x58] sm:$0xff]
        %v432 = vld [vmem:[%s1 + $0x60] sm:$0xff]
        %v433 = vld [vmem:[%s1 + $0x68] sm:$0xff]
        %v434 = vld [vmem:[%s1 + $0x70] sm:$0xff]
        %v435 = vld [vmem:[%s1 + $0x78] sm:$0xff]
        %v436 = vld [vmem:[%s2] sm:$0x1]
        %v438 = vperm.slane %v436, 0
        %440 = vmatpush.msra.mxu0 %v435
        %441 = vmatpush.msra.mxu0 %v434
        %442 = vmatpush.msra.mxu0 %v433
        %443 = vmatpush.msra.mxu0 %v432
        %444 = vmatpush.msra.mxu0 %v431
        %445 = vmatpush.msra.mxu0 %v430
        %446 = vmatpush.msra.mxu0 %v429
        %447 = vmatpush.msra.mxu0 %v428
        %448 = vmatpush.msra.mxu0 %v427
        %449 = vmatpush.msra.mxu0 %v426
        %450 = vmatpush.msra.mxu0 %v425
        %451 = vmatpush.msra.mxu0 %v424
        %452 = vmatpush.msra.mxu0 %v423
        %453 = vmatpush.msra.mxu0 %v422
        %454 = vmatpush.msra.mxu0 %v421
        %455 = vmatpush.msra.mxu0 %v420
        %456 = vmatmul.f32.gmra.mxu0 %v412
        %v457 = vpop.f32.mrf.mxu0
        %v458 = vadd.f32 %v438, %v457
        %459 = vmatmul.f32.gmra.mxu0 %v413
        %v460 = vpop.f32.mrf.mxu0
        %v461 = vadd.f32 %v438, %v460
        %462 = vmatmul.f32.gmra.mxu0 %v414
        %v463 = vpop.f32.mrf.mxu0
        %v464 = vadd.f32 %v438, %v463
        %465 = vmatmul.f32.gmra.mxu0 %v415
        %v466 = vpop.f32.mrf.mxu0
        %v467 = vadd.f32 %v438, %v466
        %468 = vmatmul.f32.gmra.mxu0 %v416
        %v469 = vpop.f32.mrf.mxu0
        %v470 = vadd.f32 %v438, %v469
        %471 = vmatmul.f32.gmra.mxu0 %v417
        %v472 = vpop.f32.mrf.mxu0
        %v473 = vadd.f32 %v438, %v472
        %474 = vmatmul.f32.gmra.mxu0 %v418
        %v475 = vpop.f32.mrf.mxu0
        %v476 = vadd.f32 %v438, %v475
        %477 = vmatmul.f32.gmra.mxu0 %v419
        %v478 = vpop.f32.mrf.mxu0
        %v479 = vadd.f32 %v438, %v478
        %480 = vdwg.mxu0
        %481 = vst [vmem:[#allocation2] sm:$0xff] 0.0
        %482 = vst [vmem:[#allocation2 + $0x8] sm:$0xff] 0.0
        %483 = vst [vmem:[#allocation2 + $0x50] sm:$0xff] 0.0
        %484 = vst [vmem:[#allocation2 + $0x58] sm:$0xff] 0.0
        %485 = vst [vmem:[#allocation2 + $0x10] sm:$0xff] %v458
        %486 = vst [vmem:[#allocation2 + $0x18] sm:$0xff] %v461
        %487 = vst [vmem:[#allocation2 + $0x20] sm:$0xff] %v464
        %488 = vst [vmem:[#allocation2 + $0x28] sm:$0xff] %v467
        %489 = vst [vmem:[#allocation2 + $0x30] sm:$0xff] %v470
        %490 = vst [vmem:[#allocation2 + $0x38] sm:$0xff] %v473
        %491 = vst [vmem:[#allocation2 + $0x40] sm:$0xff] %v476
        %492 = vst [vmem:[#allocation2 + $0x48] sm:$0xff] %v479
        %v493 = vlaneseq
        %v494 = vshrl.u32 %v493, 7
        %v495 = vadd.s32 %v494, 8
        %v496 = vadd.s32 %v494, 16
        %v497 = vadd.s32 %v494, 24
        %v498 = vadd.s32 %v494, 32
        %v499 = vadd.s32 %v494, 40
        %v500 = vadd.s32 %v494, 48
        %v501 = vadd.s32 %v494, 56
        %vm502 = vcmp.lt.s32.totalorder %v494, 0
        %v503 = vsub.s32 0, %v494
        %v504 = vsel %vm502, %v503, %v494
        %v505 = vshrl.u32 %v504, 3
        %v506 = vand.u32 %v504, 7
        %v507 = vsub.s32 0, %v506
        %v508 = vsel %vm502, %v507, %v506
        %vm509 = vcmp.lt.s32.totalorder %v495, 0
        %v510 = vsub.s32 0, %v495
        %v511 = vsel %vm509, %v510, %v495
        %v512 = vshrl.u32 %v511, 3
        %v513 = vand.u32 %v511, 7
        %v514 = vsub.s32 0, %v513
        %v515 = vsel %vm509, %v514, %v513
        %vm516 = vcmp.lt.s32.totalorder %v496, 0
        %v517 = vsub.s32 0, %v496
        %v518 = vsel %vm516, %v517, %v496
        %v519 = vshrl.u32 %v518, 3
        %v520 = vand.u32 %v518, 7
        %v521 = vsub.s32 0, %v520
        %v522 = vsel %vm516, %v521, %v520
        %vm523 = vcmp.lt.s32.totalorder %v497, 0
        %v524 = vsub.s32 0, %v497
        %v525 = vsel %vm523, %v524, %v497
        %v526 = vshrl.u32 %v525, 3
        %v527 = vand.u32 %v525, 7
        %v528 = vsub.s32 0, %v527
        %v529 = vsel %vm523, %v528, %v527
        %vm530 = vcmp.lt.s32.totalorder %v498, 0
        %v531 = vsub.s32 0, %v498
        %v532 = vsel %vm530, %v531, %v498
        %v533 = vshrl.u32 %v532, 3
        %v534 = vand.u32 %v532, 7
        %v535 = vsub.s32 0, %v534
        %v536 = vsel %vm530, %v535, %v534
        %vm537 = vcmp.lt.s32.totalorder %v499, 0
        %v538 = vsub.s32 0, %v499
        %v539 = vsel %vm537, %v538, %v499
        %v540 = vshrl.u32 %v539, 3
        %v541 = vand.u32 %v539, 7
        %v542 = vsub.s32 0, %v541
        %v543 = vsel %vm537, %v542, %v541
        %vm544 = vcmp.lt.s32.totalorder %v500, 0
        %v545 = vsub.s32 0, %v500
        %v546 = vsel %vm544, %v545, %v500
        %v547 = vshrl.u32 %v546, 3
        %v548 = vand.u32 %v546, 7
        %v549 = vsub.s32 0, %v548
        %v550 = vsel %vm544, %v549, %v548
        %vm551 = vcmp.lt.s32.totalorder %v501, 0
        %v552 = vsub.s32 0, %v501
        %v553 = vsel %vm551, %v552, %v501
        %v554 = vshrl.u32 %v553, 3
        %v555 = vand.u32 %v553, 7
        %v556 = vsub.s32 0, %v555
        %v557 = vsel %vm551, %v556, %v555
        %vm558 = vcmp.ne.s32.totalorder %v508, 0
        %vm559 = vcmp.ne.s32.totalorder %v515, 0
        %vm560 = vcmp.ne.s32.totalorder %v522, 0
        %vm561 = vcmp.ne.s32.totalorder %v529, 0
        %vm562 = vcmp.ne.s32.totalorder %v536, 0
        %vm563 = vcmp.ne.s32.totalorder %v543, 0
        %vm564 = vcmp.ne.s32.totalorder %v550, 0
        %vm565 = vcmp.ne.s32.totalorder %v557, 0
        %vm566 = vcmp.lt.s32.totalorder %v508, 0
        %vm567 = vcmp.lt.s32.totalorder %v515, 0
        %vm568 = vcmp.lt.s32.totalorder %v522, 0
        %vm569 = vcmp.lt.s32.totalorder %v529, 0
        %vm570 = vcmp.lt.s32.totalorder %v536, 0
        %vm571 = vcmp.lt.s32.totalorder %v543, 0
        %vm572 = vcmp.lt.s32.totalorder %v550, 0
        %vm573 = vcmp.lt.s32.totalorder %v557, 0
        %vm574 = vmand %vm566, %vm558
        %vm575 = vmand %vm567, %vm559
        %vm576 = vmand %vm568, %vm560
        %vm577 = vmand %vm569, %vm561
        %vm578 = vmand %vm570, %vm562
        %vm579 = vmand %vm571, %vm563
        %vm580 = vmand %vm572, %vm564
        %vm581 = vmand %vm573, %vm565
        %v582 = vadd.s32 %v508, 8
        %v583 = vadd.s32 %v515, 8
        %v584 = vadd.s32 %v522, 8
        %v585 = vadd.s32 %v529, 8
        %v586 = vadd.s32 %v536, 8
        %v587 = vadd.s32 %v543, 8
        %v588 = vadd.s32 %v550, 8
        %v589 = vadd.s32 %v557, 8
        %v590 = vsel %vm574, %v582, %v508
        %v591 = vsel %vm575, %v583, %v515
        %v592 = vsel %vm576, %v584, %v522
        %v593 = vsel %vm577, %v585, %v529
        %v594 = vsel %vm578, %v586, %v536
        %v595 = vsel %vm579, %v587, %v543
        %v596 = vsel %vm580, %v588, %v550
        %v597 = vsel %vm581, %v589, %v557
        %vm598 = vcmp.ne.s32.totalorder %v590, 0
        %vm599 = vcmp.ne.s32.totalorder %v591, 0
        %vm600 = vcmp.ne.s32.totalorder %v592, 0
        %vm601 = vcmp.ne.s32.totalorder %v593, 0
        %vm602 = vcmp.ne.s32.totalorder %v594, 0
        %vm603 = vcmp.ne.s32.totalorder %v595, 0
        %vm604 = vcmp.ne.s32.totalorder %v596, 0
        %vm605 = vcmp.ne.s32.totalorder %v597, 0
        %v606 = vsel %vm598, 1, 0
        %v607 = vsel %vm599, 1, 0
        %v608 = vsel %vm600, 1, 0
        %v609 = vsel %vm601, 1, 0
        %v610 = vsel %vm602, 1, 0
        %v611 = vsel %vm603, 1, 0
        %v612 = vsel %vm604, 1, 0
        %v613 = vsel %vm605, 1, 0
        %v614 = vcvt.s32.f32 %v606
        %v615 = vcvt.s32.f32 %v607
        %v616 = vcvt.s32.f32 %v608
        %v617 = vcvt.s32.f32 %v609
        %v618 = vcvt.s32.f32 %v610
        %v619 = vcvt.s32.f32 %v611
        %v620 = vcvt.s32.f32 %v612
        %v621 = vcvt.s32.f32 %v613
        %vm622 = vcmp.ne.s32.totalorder %v590, 7
        %vm623 = vcmp.ne.s32.totalorder %v591, 7
        %vm624 = vcmp.ne.s32.totalorder %v592, 7
        %vm625 = vcmp.ne.s32.totalorder %v593, 7
        %vm626 = vcmp.ne.s32.totalorder %v594, 7
        %vm627 = vcmp.ne.s32.totalorder %v595, 7
        %vm628 = vcmp.ne.s32.totalorder %v596, 7
        %vm629 = vcmp.ne.s32.totalorder %v597, 7
        %v630 = vsel %vm622, 1, 0
        %v631 = vsel %vm623, 1, 0
        %v632 = vsel %vm624, 1, 0
        %v633 = vsel %vm625, 1, 0
        %v634 = vsel %vm626, 1, 0
        %v635 = vsel %vm627, 1, 0
        %v636 = vsel %vm628, 1, 0
        %v637 = vsel %vm629, 1, 0
        %v638 = vcvt.s32.f32 %v630
        %v639 = vcvt.s32.f32 %v631
        %v640 = vcvt.s32.f32 %v632
        %v641 = vcvt.s32.f32 %v633
        %v642 = vcvt.s32.f32 %v634
        %v643 = vcvt.s32.f32 %v635
        %v644 = vcvt.s32.f32 %v636
        %v645 = vcvt.s32.f32 %v637
        %v646 = vld [vmem:[%s3] sm:$0xff]
        %v647 = vld [vmem:[%s3 + $0x8] sm:$0x1]
        %v648 = vld [vmem:[#allocation2 + $0x7] sm:$0xff]
        %v649 = vld [vmem:[#allocation2 + $0xf] sm:$0xff]
        %v650 = vld [vmem:[#allocation2 + $0x17] sm:$0xff]
        %v651 = vld [vmem:[#allocation2 + $0x1f] sm:$0xff]
        %v652 = vld [vmem:[#allocation2 + $0x27] sm:$0xff]
        %v653 = vld [vmem:[#allocation2 + $0x2f] sm:$0xff]
        %v654 = vld [vmem:[#allocation2 + $0x37] sm:$0xff]
        %v655 = vld [vmem:[#allocation2 + $0x3f] sm:$0xff]
        %v656 = vperm.slane %v646, 0
        %v657 = vmul.f32 %v648, %v656
        %v658 = vmul.f32 %v649, %v656
        %v659 = vmul.f32 %v650, %v656
        %v660 = vmul.f32 %v651, %v656
        %v661 = vmul.f32 %v652, %v656
        %v662 = vmul.f32 %v653, %v656
        %v663 = vmul.f32 %v654, %v656
        %v664 = vmul.f32 %v655, %v656
        %v665 = vmul.f32 %v657, %v614
        %v666 = vmul.f32 %v658, %v615
        %v667 = vmul.f32 %v659, %v616
        %v668 = vmul.f32 %v660, %v617
        %v669 = vmul.f32 %v661, %v618
        %v670 = vmul.f32 %v662, %v619
        %v671 = vmul.f32 %v663, %v620
        %v672 = vmul.f32 %v664, %v621
        %v673 = vadd.f32 %v665, 0.0
        %v674 = vadd.f32 %v666, 0.0
        %v675 = vadd.f32 %v667, 0.0
        %v676 = vadd.f32 %v668, 0.0
        %v677 = vadd.f32 %v669, 0.0
        %v678 = vadd.f32 %v670, 0.0
        %v679 = vadd.f32 %v671, 0.0
        %v680 = vadd.f32 %v672, 0.0
        %v681 = vld [vmem:[#allocation2 + $0x8] sm:$0xff]
        %v682 = vld [vmem:[#allocation2 + $0x10] sm:$0xff]
        %v683 = vld [vmem:[#allocation2 + $0x18] sm:$0xff]
        %v684 = vld [vmem:[#allocation2 + $0x20] sm:$0xff]
        %v685 = vld [vmem:[#allocation2 + $0x28] sm:$0xff]
        %v686 = vld [vmem:[#allocation2 + $0x30] sm:$0xff]
        %v687 = vld [vmem:[#allocation2 + $0x38] sm:$0xff]
        %v688 = vld [vmem:[#allocation2 + $0x40] sm:$0xff]
        %v689 = vperm.slane %v646, 1
        %v690 = vmul.f32 %v681, %v689
        %v691 = vmul.f32 %v682, %v689
        %v692 = vmul.f32 %v683, %v689
        %v693 = vmul.f32 %v684, %v689
        %v694 = vmul.f32 %v685, %v689
        %v695 = vmul.f32 %v686, %v689
        %v696 = vmul.f32 %v687, %v689
        %v697 = vmul.f32 %v688, %v689
        %v698 = vadd.f32 %v673, %v690
        %v699 = vadd.f32 %v674, %v691
        %v700 = vadd.f32 %v675, %v692
        %v701 = vadd.f32 %v676, %v693
        %v702 = vadd.f32 %v677, %v694
        %v703 = vadd.f32 %v678, %v695
        %v704 = vadd.f32 %v679, %v696
        %v705 = vadd.f32 %v680, %v697
        %v706 = vld [vmem:[#allocation2 + $0x9] sm:$0xff]
        %v707 = vld [vmem:[#allocation2 + $0x11] sm:$0xff]
        %v708 = vld [vmem:[#allocation2 + $0x19] sm:$0xff]
        %v709 = vld [vmem:[#allocation2 + $0x21] sm:$0xff]
        %v710 = vld [vmem:[#allocation2 + $0x29] sm:$0xff]
        %v711 = vld [vmem:[#allocation2 + $0x31] sm:$0xff]
        %v712 = vld [vmem:[#allocation2 + $0x39] sm:$0xff]
        %v713 = vld [vmem:[#allocation2 + $0x41] sm:$0xff]
        %v714 = vperm.slane %v646, 2
        %v715 = vmul.f32 %v706, %v714
        %v716 = vmul.f32 %v707, %v714
        %v717 = vmul.f32 %v708, %v714
        %v718 = vmul.f32 %v709, %v714
        %v719 = vmul.f32 %v710, %v714
        %v720 = vmul.f32 %v711, %v714
        %v721 = vmul.f32 %v712, %v714
        %v722 = vmul.f32 %v713, %v714
        %v723 = vmul.f32 %v715, %v638
        %v724 = vmul.f32 %v716, %v639
        %v725 = vmul.f32 %v717, %v640
        %v726 = vmul.f32 %v718, %v641
        %v727 = vmul.f32 %v719, %v642
        %v728 = vmul.f32 %v720, %v643
        %v729 = vmul.f32 %v721, %v644
        %v730 = vmul.f32 %v722, %v645
        %v731 = vadd.f32 %v698, %v723
        %v732 = vadd.f32 %v699, %v724
        %v733 = vadd.f32 %v700, %v725
        %v734 = vadd.f32 %v701, %v726
        %v735 = vadd.f32 %v702, %v727
        %v736 = vadd.f32 %v703, %v728
        %v737 = vadd.f32 %v704, %v729
        %v738 = vadd.f32 %v705, %v730
        %v739 = vld [vmem:[#allocation2 + $0x47] sm:$0xff]
        %v740 = vperm.slane %v646, 3
        %v741 = vmul.f32 %v649, %v740
        %v742 = vmul.f32 %v650, %v740
        %v743 = vmul.f32 %v651, %v740
        %v744 = vmul.f32 %v652, %v740
        %v745 = vmul.f32 %v653, %v740
        %v746 = vmul.f32 %v654, %v740
        %v747 = vmul.f32 %v655, %v740
        %v748 = vmul.f32 %v739, %v740
        %v749 = vmul.f32 %v741, %v614
        %v750 = vmul.f32 %v742, %v615
        %v751 = vmul.f32 %v743, %v616
        %v752 = vmul.f32 %v744, %v617
        %v753 = vmul.f32 %v745, %v618
        %v754 = vmul.f32 %v746, %v619
        %v755 = vmul.f32 %v747, %v620
        %v756 = vmul.f32 %v748, %v621
        %v757 = vadd.f32 %v731, %v749
        %v758 = vadd.f32 %v732, %v750
        %v759 = vadd.f32 %v733, %v751
        %v760 = vadd.f32 %v734, %v752
        %v761 = vadd.f32 %v735, %v753
        %v762 = vadd.f32 %v736, %v754
        %v763 = vadd.f32 %v737, %v755
        %v764 = vadd.f32 %v738, %v756
        %v765 = vld [vmem:[#allocation2 + $0x48] sm:$0xff]
        %v766 = vperm.slane %v646, 4
        %v767 = vmul.f32 %v682, %v766
        %v768 = vmul.f32 %v683, %v766
        %v769 = vmul.f32 %v684, %v766
        %v770 = vmul.f32 %v685, %v766
        %v771 = vmul.f32 %v686, %v766
        %v772 = vmul.f32 %v687, %v766
        %v773 = vmul.f32 %v688, %v766
        %v774 = vmul.f32 %v765, %v766
        %v775 = vadd.f32 %v757, %v767
        %v776 = vadd.f32 %v758, %v768
        %v777 = vadd.f32 %v759, %v769
        %v778 = vadd.f32 %v760, %v770
        %v779 = vadd.f32 %v761, %v771
        %v780 = vadd.f32 %v762, %v772
        %v781 = vadd.f32 %v763, %v773
        %v782 = vadd.f32 %v764, %v774
        %v783 = vld [vmem:[#allocation2 + $0x49] sm:$0xff]
        %v784 = vperm.slane %v646, 5
        %v785 = vmul.f32 %v707, %v784
        %v786 = vmul.f32 %v708, %v784
        %v787 = vmul.f32 %v709, %v784
        %v788 = vmul.f32 %v710, %v784
        %v789 = vmul.f32 %v711, %v784
        %v790 = vmul.f32 %v712, %v784
        %v791 = vmul.f32 %v713, %v784
        %v792 = vmul.f32 %v783, %v784
        %v793 = vmul.f32 %v785, %v638
        %v794 = vmul.f32 %v786, %v639
        %v795 = vmul.f32 %v787, %v640
        %v796 = vmul.f32 %v788, %v641
        %v797 = vmul.f32 %v789, %v642
        %v798 = vmul.f32 %v790, %v643
        %v799 = vmul.f32 %v791, %v644
        %v800 = vmul.f32 %v792, %v645
        %v801 = vadd.f32 %v775, %v793
        %v802 = vadd.f32 %v776, %v794
        %v803 = vadd.f32 %v777, %v795
        %v804 = vadd.f32 %v778, %v796
        %v805 = vadd.f32 %v779, %v797
        %v806 = vadd.f32 %v780, %v798
        %v807 = vadd.f32 %v781, %v799
        %v808 = vadd.f32 %v782, %v800
        %v809 = vld [vmem:[#allocation2 + $0x4f] sm:$0xff]
        %v810 = vperm.slane %v646, 6
        %v811 = vmul.f32 %v650, %v810
        %v812 = vmul.f32 %v651, %v810
        %v813 = vmul.f32 %v652, %v810
        %v814 = vmul.f32 %v653, %v810
        %v815 = vmul.f32 %v654, %v810
        %v816 = vmul.f32 %v655, %v810
        %v817 = vmul.f32 %v739, %v810
        %v818 = vmul.f32 %v809, %v810
        %v819 = vmul.f32 %v811, %v614
        %v820 = vmul.f32 %v812, %v615
        %v821 = vmul.f32 %v813, %v616
        %v822 = vmul.f32 %v814, %v617
        %v823 = vmul.f32 %v815, %v618
        %v824 = vmul.f32 %v816, %v619
        %v825 = vmul.f32 %v817, %v620
        %v826 = vmul.f32 %v818, %v621
        %v827 = vadd.f32 %v801, %v819
        %v828 = vadd.f32 %v802, %v820
        %v829 = vadd.f32 %v803, %v821
        %v830 = vadd.f32 %v804, %v822
        %v831 = vadd.f32 %v805, %v823
        %v832 = vadd.f32 %v806, %v824
        %v833 = vadd.f32 %v807, %v825
        %v834 = vadd.f32 %v808, %v826
        %v835 = vld [vmem:[#allocation2 + $0x50] sm:$0xff]
        %v836 = vperm.slane %v646, 7
        %v837 = vmul.f32 %v683, %v836
        %v838 = vmul.f32 %v684, %v836
        %v839 = vmul.f32 %v685, %v836
        %v840 = vmul.f32 %v686, %v836
        %v841 = vmul.f32 %v687, %v836
        %v842 = vmul.f32 %v688, %v836
        %v843 = vmul.f32 %v765, %v836
        %v844 = vmul.f32 %v835, %v836
        %v845 = vadd.f32 %v827, %v837
        %v846 = vadd.f32 %v828, %v838
        %v847 = vadd.f32 %v829, %v839
        %v848 = vadd.f32 %v830, %v840
        %v849 = vadd.f32 %v831, %v841
        %v850 = vadd.f32 %v832, %v842
        %v851 = vadd.f32 %v833, %v843
        %v852 = vadd.f32 %v834, %v844
        %v853 = vld [vmem:[#allocation2 + $0x51] sm:$0xff]
        %v854 = vperm.slane %v647, 0
        %v855 = vmul.f32 %v708, %v854
        %v856 = vmul.f32 %v709, %v854
        %v857 = vmul.f32 %v710, %v854
        %v858 = vmul.f32 %v711, %v854
        %v859 = vmul.f32 %v712, %v854
        %v860 = vmul.f32 %v713, %v854
        %v861 = vmul.f32 %v783, %v854
        %v862 = vmul.f32 %v853, %v854
        %v863 = vmul.f32 %v855, %v638
        %v864 = vmul.f32 %v856, %v639
        %v865 = vmul.f32 %v857, %v640
        %v866 = vmul.f32 %v858, %v641
        %v867 = vmul.f32 %v859, %v642
        %v868 = vmul.f32 %v860, %v643
        %v869 = vmul.f32 %v861, %v644
        %v870 = vmul.f32 %v862, %v645
        %v871 = vadd.f32 %v845, %v863
        %v872 = vadd.f32 %v846, %v864
        %v873 = vadd.f32 %v847, %v865
        %v874 = vadd.f32 %v848, %v866
        %v875 = vadd.f32 %v849, %v867
        %v876 = vadd.f32 %v850, %v868
        %v877 = vadd.f32 %v851, %v869
        %v878 = vadd.f32 %v852, %v870
        %v879 = vld [vmem:[%s5] sm:$0x1]
        %v880 = vld [vmem:[%s4] sm:$0x1]
        %v882 = vperm.slane %v880, 0
        %v884 = vadd.f32 %v871, %v882
        %v885 = vadd.f32 %v872, %v882
        %v886 = vadd.f32 %v873, %v882
        %v887 = vadd.f32 %v874, %v882
        %v888 = vadd.f32 %v875, %v882
        %v889 = vadd.f32 %v876, %v882
        %v890 = vadd.f32 %v877, %v882
        %v891 = vadd.f32 %v878, %v882
        %v893 = vperm.slane %v879, 0
        %v895 = vmul.f32 %v893, %v884
        %v896 = vmul.f32 %v893, %v885
        %v897 = vmul.f32 %v893, %v886
        %v898 = vmul.f32 %v893, %v887
        %v899 = vmul.f32 %v893, %v888
        %v900 = vmul.f32 %v893, %v889
        %v901 = vmul.f32 %v893, %v890
        %v902 = vmul.f32 %v893, %v891
        %v903 = vadd.f32 %v895, %v458
        %v904 = vadd.f32 %v896, %v461
        %v905 = vadd.f32 %v897, %v464
        %v906 = vadd.f32 %v898, %v467
        %v907 = vadd.f32 %v899, %v470
        %v908 = vadd.f32 %v900, %v473
        %v909 = vadd.f32 %v901, %v476
        %v910 = vadd.f32 %v902, %v479
        %v911 = vld [vmem:[%s6] sm:$0xff]
        %v912 = vld [vmem:[%s6 + $0x8] sm:$0xff]
        %v913 = vld [vmem:[%s6 + $0x10] sm:$0xff]
        %v914 = vld [vmem:[%s6 + $0x18] sm:$0xff]
        %v915 = vld [vmem:[%s6 + $0x20] sm:$0xff]
        %v916 = vld [vmem:[%s6 + $0x28] sm:$0xff]
        %v917 = vld [vmem:[%s6 + $0x30] sm:$0xff]
        %v918 = vld [vmem:[%s6 + $0x38] sm:$0xff]
        %v919 = vld [vmem:[%s6 + $0x40] sm:$0xff]
        %v920 = vld [vmem:[%s6 + $0x48] sm:$0xff]
        %v921 = vld [vmem:[%s6 + $0x50] sm:$0xff]
        %v922 = vld [vmem:[%s6 + $0x58] sm:$0xff]
        %v923 = vld [vmem:[%s6 + $0x60] sm:$0xff]
        %v924 = vld [vmem:[%s6 + $0x68] sm:$0xff]
        %v925 = vld [vmem:[%s6 + $0x70] sm:$0xff]
        %v926 = vld [vmem:[%s6 + $0x78] sm:$0xff]
        %v927 = vld [vmem:[%s7] sm:$0x1]
        %v929 = vperm.slane %v927, 0
        %931 = vmatpush.msra.mxu0 %v926
        %932 = vmatpush.msra.mxu0 %v925
        %933 = vmatpush.msra.mxu0 %v924
        %934 = vmatpush.msra.mxu0 %v923
        %935 = vmatpush.msra.mxu0 %v922
        %936 = vmatpush.msra.mxu0 %v921
        %937 = vmatpush.msra.mxu0 %v920
        %938 = vmatpush.msra.mxu0 %v919
        %939 = vmatpush.msra.mxu0 %v918
        %940 = vmatpush.msra.mxu0 %v917
        %941 = vmatpush.msra.mxu0 %v916
        %942 = vmatpush.msra.mxu0 %v915
        %943 = vmatpush.msra.mxu0 %v914
        %944 = vmatpush.msra.mxu0 %v913
        %945 = vmatpush.msra.mxu0 %v912
        %946 = vmatpush.msra.mxu0 %v911
        %947 = vmatmul.f32.gmra.mxu0 %v903
        %v948 = vpop.f32.mrf.mxu0
        %v949 = vadd.f32 %v929, %v948
        %950 = vmatmul.f32.gmra.mxu0 %v904
        %v951 = vpop.f32.mrf.mxu0
        %v952 = vadd.f32 %v929, %v951
        %953 = vmatmul.f32.gmra.mxu0 %v905
        %v954 = vpop.f32.mrf.mxu0
        %v955 = vadd.f32 %v929, %v954
        %956 = vmatmul.f32.gmra.mxu0 %v906
        %v957 = vpop.f32.mrf.mxu0
        %v958 = vadd.f32 %v929, %v957
        %959 = vmatmul.f32.gmra.mxu0 %v907
        %v960 = vpop.f32.mrf.mxu0
        %v961 = vadd.f32 %v929, %v960
        %962 = vmatmul.f32.gmra.mxu0 %v908
        %v963 = vpop.f32.mrf.mxu0
        %v964 = vadd.f32 %v929, %v963
        %965 = vmatmul.f32.gmra.mxu0 %v909
        %v966 = vpop.f32.mrf.mxu0
        %v967 = vadd.f32 %v929, %v966
        %968 = vmatmul.f32.gmra.mxu0 %v910
        %v969 = vpop.f32.mrf.mxu0
        %v970 = vadd.f32 %v929, %v969
        %971 = vdwg.mxu0
        %v972 = vadd.f32 %v949, %v952
        %v973 = vadd.f32 %v972, %v955
        %v974 = vadd.f32 %v973, %v958
        %v975 = vadd.f32 %v974, %v961
        %v976 = vadd.f32 %v975, %v964
        %v977 = vadd.f32 %v976, %v967
        %v978 = vadd.f32 %v977, %v970
        %v979 = vrot.slane %v978, 4
        %v980 = vadd.f32 %v978, %v979
        %v981 = vrot.slane %v980, 2
        %v982 = vadd.f32 %v980, %v981
        %v983 = vrot.slane %v982, 1
        %v984 = vadd.f32 %v982, %v983
        %v985 = vmul.f32 %v984, 0.015625
        %v986 = vld [vmem:[%s8] sm:$0xff]
        %v987 = vld [vmem:[%s8 + $0x8] sm:$0xff]
        %v988 = vld [vmem:[%s8 + $0x10] sm:$0xff]
        %v989 = vld [vmem:[%s8 + $0x18] sm:$0xff]
        %v990 = vld [vmem:[%s8 + $0x20] sm:$0xff]
        %v991 = vld [vmem:[%s8 + $0x28] sm:$0xff]
        %v992 = vld [vmem:[%s8 + $0x30] sm:$0xff]
        %v993 = vld [vmem:[%s8 + $0x38] sm:$0xff]
        %v994 = vld [vmem:[%s8 + $0x40] sm:$0xff]
        %v995 = vld [vmem:[%s8 + $0x48] sm:$0xff]
        %v996 = vld [vmem:[%s8 + $0x50] sm:$0xff]
        %v997 = vld [vmem:[%s8 + $0x58] sm:$0xff]
        %v998 = vld [vmem:[%s8 + $0x60] sm:$0xff]
        %v999 = vld [vmem:[%s8 + $0x68] sm:$0xff]
        %v1000 = vld [vmem:[%s8 + $0x70] sm:$0xff]
        %v1001 = vld [vmem:[%s8 + $0x78] sm:$0xff]
        %v1002 = vld [vmem:[%s9] sm:$0x1]
        %1003 = vmatpush.msra.mxu0 %v1001
        %1004 = vmatpush.msra.mxu0 %v1000
        %1005 = vmatpush.msra.mxu0 %v999
        %1006 = vmatpush.msra.mxu0 %v998
        %1007 = vmatpush.msra.mxu0 %v997
        %1008 = vmatpush.msra.mxu0 %v996
        %1009 = vmatpush.msra.mxu0 %v995
        %1010 = vmatpush.msra.mxu0 %v994
        %1011 = vmatpush.msra.mxu0 %v993
        %1012 = vmatpush.msra.mxu0 %v992
        %1013 = vmatpush.msra.mxu0 %v991
        %1014 = vmatpush.msra.mxu0 %v990
        %1015 = vmatpush.msra.mxu0 %v989
        %1016 = vmatpush.msra.mxu0 %v988
        %1017 = vmatpush.msra.mxu0 %v987
        %1018 = vmatpush.msra.mxu0 %v986
        %1019 = vmatmul.f32.gmra.mxu0 %v985
        %v1020 = vpop.f32.mrf.mxu0
        %v1021 = vadd.f32 %v1002, %v1020
        %1022 = vdwg.mxu0
        %v1023 = vmax.f32 %v1021, 0.0
        %v1024 = vld [vmem:[%s10] sm:$0xff]
        %v1025 = vld [vmem:[%s10 + $0x8] sm:$0xff]
        %v1026 = vld [vmem:[%s10 + $0x10] sm:$0xff]
        %v1027 = vld [vmem:[%s10 + $0x18] sm:$0xff]
        %v1028 = vld [vmem:[%s11] sm:$0x1]
        %vm1029 = vcmask 261120
        %v1031 = vsel %vm1029, %v1023, 0
        %1033 = vmatpush.msra.mxu0 0.0
        %1034 = vmatpush.msra.mxu0 0.0
        %1035 = vmatpush.msra.mxu0 0.0
        %1036 = vmatpush.msra.mxu0 0.0
        %1037 = vmatpush.msra.mxu0 0.0
        %1038 = vmatpush.msra.mxu0 0.0
        %1039 = vmatpush.msra.mxu0 0.0
        %1040 = vmatpush.msra.mxu0 0.0
        %1041 = vmatpush.msra.mxu0 0.0
        %1042 = vmatpush.msra.mxu0 0.0
        %1043 = vmatpush.msra.mxu0 0.0
        %1044 = vmatpush.msra.mxu0 0.0
        %1045 = vmatpush.msra.mxu0 %v1027
        %1046 = vmatpush.msra.mxu0 %v1026
        %1047 = vmatpush.msra.mxu0 %v1025
        %1048 = vmatpush.msra.mxu0 %v1024
        %1049 = vmatmul.f32.gmra.mxu0 %v1031
        %v1050 = vpop.f32.mrf.mxu0
        %v1051 = vadd.f32 %v1028, %v1050
        %1052 = vdwg.mxu0
        %v1053 = vxor.u32 %v1051, 2147483648
        %v1054 = vmul.f32 %v1053, 1.442695
        %v1055 = vpow.pop %v1054
        %v1056 = vadd.f32 %v1055, 1.0
        %v1057 = vrcp.pop %v1056
        %v1058 = vmul.f32 %v1056, %v1057
        %v1059 = vsub.f32 1.0, %v1058
        %v1060 = vmul.f32 %v1057, %v1059
        %v1061 = vadd.f32 %v1057, %v1060
        %vm1062 = vweird.f32 %v1056
        %vm1063 = vweird.f32 %v1057
        %vm1064 = vmor %vm1062, %vm1063
        %v1065 = vsel %vm1064, %v1057, %v1061
        %v1066 = vand.u32 2147483647, %v1056
        %vm1067 = vcmp.eq.f32.partialorder %v1066, 8.507059e+37
        %v1068 = vand.u32 %v1056, 2147483648
        %v1069 = vor.u32 1.1754944e-38, %v1068
        %v1070 = vsel %vm1067, %v1069, %v1065
        %v1071 = vmul.f32 1.0, %v1070
        %v1072 = vperm.slane %v1071, 0
        %v1073 = vmul.f32 %v949, %v1072
        %v1074 = vmul.f32 %v952, %v1072
        %v1075 = vmul.f32 %v955, %v1072
        %v1076 = vmul.f32 %v958, %v1072
        %v1077 = vmul.f32 %v961, %v1072
        %v1078 = vmul.f32 %v964, %v1072
        %v1079 = vmul.f32 %v967, %v1072
        %v1080 = vmul.f32 %v970, %v1072
        %1081 = vst [vmem:[%s406] sm:$0xff] %v1073
        %1082 = vst [vmem:[%s406 + $0x8] sm:$0xff] %v1074
        %1083 = vst [vmem:[%s406 + $0x10] sm:$0xff] %v1075
        %1084 = vst [vmem:[%s406 + $0x18] sm:$0xff] %v1076
        %1085 = vst [vmem:[%s406 + $0x20] sm:$0xff] %v1077
        %1086 = vst [vmem:[%s406 + $0x28] sm:$0xff] %v1078
        %1087 = vst [vmem:[%s406 + $0x30] sm:$0xff] %v1079
        %1088 = vst [vmem:[%s406 + $0x38] sm:$0xff] %v1080
        %s1089 = sand.u32 %s291, 1
        %s1090 = scalar_lea.sflag [#allocation4], %s1089
        %s1091 = sand.u32 %s291, 1
        %s1092 = smul.addr %s1091, 64
        %s1093 = scalar_lea.vmem [#allocation3], %s1092
        // Predicated region
        $region69: #{semlp_forward.1} parent=67 // pred_check
          %p1094 = pneg %p301
        $region70: #{semlp_forward.1} parent=67 // pred_check_branch
          %1096 = sbr.rel (%p1094) target = $region72
        $region71: #{semlp_forward.1} parent=67 // pred_region
          %1098 = vsyncadd %s1090, 0
          %s1099 = smul.addr %s26, 8
          %s1100 = smul.addr %s1099, 8
          %s1101 = scalar_lea.hbm %s12, %s1100
          %s1102 = sshll.u32 %s1093, 4
          %s1103 = int_to_ptr.vmem [resolvable:$true] %s1102
          %s1104 = sshll.u32 %s1101, 4
          %s1105 = int_to_ptr.hbm [resolvable:$true] %s1104
          %1110 = dma.vmem_to_hbm [thread:$0]  %s1103, 1024, %s1105, %s1090, 128, 128, 8
        $region72: #{semlp_forward.1} parent=67 // pred_fallthru
          _
      $region68: #{semlp_forward.1} parent=5 // pred_fallthru
        _
      %p1111 = scmp.le.s32.totalorder 2, %s21
      // Predicated region
      $region73: #{semlp_forward.1} parent=5 // pred_check
        %p1112 = pneg %p1111
      $region74: #{semlp_forward.1} parent=5 // pred_check_branch
        %1114 = sbr.rel (%p1112) target = $region76
      $region75: #{semlp_forward.1} parent=5 // pred_region
        %s1115 = ssub.s32 %s21, 2
        // Predicated region
        $region77: #{semlp_forward.1} parent=75 // pred_check
          %p1116 = pneg %p307
        $region78: #{semlp_forward.1} parent=75 // pred_check_branch
          %1118 = sbr.rel (%p1116) target = $region80
        $region79: #{semlp_forward.1} parent=75 // pred_region
          %s1119 = sand.u32 %s292, 1
          %s1120 = scalar_lea.sflag [#allocation4], %s1119
          %s1121 = sand.u32 %s292, 1
          %s1122 = smul.addr %s1121, 64
          %s1123 = scalar_lea.vmem [#allocation3], %s1122
          %1125 = dma.done %s1120, 1024
        $region80: #{semlp_forward.1} parent=75 // pred_fallthru
          _
      $region76: #{semlp_forward.1} parent=5 // pred_fallthru
        _
    $region6: #{semlp_forward.1} parent=1 // loop_footer
      %s25 = sadd.s32 1, %s21
    $region7: #{semlp_forward.1} parent=1 // loop_footer_branch
      %20 = sbr.rel target = $region3
    $region8: #{semlp_forward.1} parent=1 // loop_exit
      _
    %1126 = vsyncpa [#allocation4], 1
    %s1127 = scalar_lea.sflag [#allocation4], 1
    %1128 = vsyncpa %s1127, 1

</llo_original>
